<compile_context>
chip_gen: v6e
topology: v6e:2x2x1
jax: 0.10.0
libtpu: 0.0.40
codegen_flags: <defaults>
</compile_context>

<pallas_src>
import functools
import math

import jax
import jax.numpy as jnp
from jax import lax
from jax.experimental import pallas as pl
from jax.experimental.pallas import tpu as pltpu


def _mha_kernel(q_ref, kp_ref, vp_ref, wq_ref, bq_ref, wo_ref, bo_ref,
                o_ref, *scratch,
                G, dk, inv_sqrt_dk, mxu_dtype, approx_recip, acc_in_out):
    g = pl.program_id(2)
    last_g = pl.num_programs(2) - 1

    q = q_ref[0]          # (block_q, D)     compute dtype
    kp = kp_ref[0, 0]     # (Sk, G*dk)       pre-projected keys for this head group
    vp = vp_ref[0, 0]     # (Sk, G*dk)       pre-projected values for this head group
    wq = wq_ref[0]        # (D, G*dk)        group-g column block of W_Q^T
    wo = wo_ref[0]        # (G*dk, D)        group-g row block of W_out^T

    # Group-wide Q projection (full-D contraction, G*dk-wide output), f32 accumulation.
    qh = jnp.dot(q, wq, preferred_element_type=jnp.float32) + bq_ref[0]   # (block_q, G*dk)
    qh = qh * inv_sqrt_dk   # fold 1/sqrt(d_k) into Q (block_q*G*dk muls, not block_q*Sk)

    # Per-head attention inside the group (static unrolled loop).
    ctx_parts = []
    for h in range(G):
        lo = h * dk
        qhh = qh[:, lo:lo + dk].astype(mxu_dtype)     # (block_q, dk)
        khh = kp[:, lo:lo + dk]                       # (Sk, dk)
        # scores = Q K^T as an NT contraction — no in-kernel transpose.
        scores = lax.dot_general(
            qhh, khh, dimension_numbers=(((1,), (1,)), ((), ())),
            preferred_element_type=jnp.float32)       # (block_q, Sk)
        # Numerically stable softmax over keys, kept in f32.
        m = jnp.max(scores, axis=-1, keepdims=True)
        e = jnp.exp(scores - m)
        denom = jnp.sum(e, axis=-1, keepdims=True)
        attn = (e * pl.reciprocal(denom, approx=approx_recip)).astype(mxu_dtype)
        ctx_parts.append(jnp.dot(attn, vp[:, lo:lo + dk],
                                 preferred_element_type=jnp.float32))     # (block_q, dk)

    # Assemble the group's context head-major, then ONE G*dk-wide output projection.
    ctx = ctx_parts[0] if G == 1 else jnp.concatenate(ctx_parts, axis=-1)  # (block_q, G*dk)
    contrib = jnp.dot(ctx.astype(mxu_dtype), wo,
                      preferred_element_type=jnp.float32)                  # (block_q, D)

    if acc_in_out:
        # f32 output: accumulate directly into the VMEM-resident output block.
        @pl.when(g == 0)
        def _():
            o_ref[0] = contrib

        @pl.when(g != 0)
        def _():
            o_ref[0] = o_ref[0] + contrib

        @pl.when(g == last_g)
        def _():
            o_ref[0] = o_ref[0] + bo_ref[...]
    else:
        acc_ref = scratch[0]

        @pl.when(g == 0)
        def _():
            acc_ref[...] = contrib

        @pl.when(g != 0)
        def _():
            acc_ref[...] += contrib

        @pl.when(g == last_g)
        def _():
            o_ref[0] = (acc_ref[...] + bo_ref[...]).astype(o_ref.dtype)


def multi_head_attention(query, key, value, params, num_heads, *,
                         compute_dtype=jnp.bfloat16, heads_per_group=None):
    """Fused MHA forward.  query/key/value: (B, S, d_model).  Returns (B, Sq, d_model).

    compute_dtype: dtype of the MXU operands. bfloat16 (default) is the native MXU path
    on all TPU generations (accumulation and softmax stay f32); float32 gives exact
    parity with the PyTorch module for testing.
    """
    B, Sq, D = query.shape
    Sk = key.shape[1]
    assert D % num_heads == 0, "d_model must be divisible by num_heads"
    H = num_heads
    dk = D // H
    out_dtype = query.dtype
    compute_dtype = jnp.dtype(compute_dtype)
    wq, bq, wk, bk, wv, bv, wo, bo = params
    f32 = jnp.float32

    # ---- Head grouping: smallest divisor G of H with G*dk >= 256 (full MXU width on
    # v6e/v7x, >= 2x the v5e MXU); fall back to all heads in one group for tiny models.
    if heads_per_group is None:
        G = H
        for cand in range(1, H + 1):
            if H % cand == 0 and cand * dk >= 256:
                G = cand
                break
    else:
        G = heads_per_group
    assert H % G == 0, "heads_per_group must divide num_heads"
    NG = H // G
    gdk = G * dk

    # ---- One-time XLA-side K/V projections (computed in f32, laid out group-major).
    kp = key.astype(f32) @ wk.T.astype(f32) + bk.reshape(-1).astype(f32)     # (B, Sk, D)
    vp = value.astype(f32) @ wv.T.astype(f32) + bv.reshape(-1).astype(f32)   # (B, Sk, D)
    kp = kp.reshape(B, Sk, NG, gdk).transpose(0, 2, 1, 3).astype(compute_dtype)  # (B,NG,Sk,gdk)
    vp = vp.reshape(B, Sk, NG, gdk).transpose(0, 2, 1, 3).astype(compute_dtype)

    # ---- One-time weight re-layout (hoists every transpose out of the kernel).
    wq_g = jnp.transpose(wq.reshape(NG, gdk, D), (0, 2, 1)).astype(compute_dtype)  # (NG,D,gdk)
    bq_g = jnp.asarray(bq, f32).reshape(NG, 1, gdk)
    wo_g = wo.T.reshape(NG, gdk, D).astype(compute_dtype)                          # (NG,gdk,D)
    bo_r = jnp.asarray(bo, f32).reshape(1, D)

    q = query.astype(compute_dtype)

    # ---- block_q: largest multiple-of-8 divisor of Sq under a score-matrix VMEM bound;
    # full-Sq fallback only when no aligned divisor exists.
    target = 512
    while target > 64 and target * Sk * 4 > (2 << 20):
        target //= 2
    cands = [t for t in range(8 * (min(target, Sq) // 8), 7, -8) if Sq % t == 0]
    block_q = cands[0] if cands else Sq
    # v7x has 2 TensorCores: make sure the parallel grid extent B*n_q is >= 2 if possible.
    if B * (Sq // block_q) < 2 and block_q % 16 == 0:
        block_q //= 2
    n_q = Sq // block_q

    acc_in_out = (out_dtype == jnp.float32)

    # ---- Explicit scoped-VMEM budget sized to the actual footprint (clamped 32–64 MiB,
    # safe on all generations; default scoped limits are 16/32 MiB).
    cs = compute_dtype.itemsize
    est = 2 * (block_q * D * cs                 # q block (double buffered)
               + 2 * Sk * gdk * cs              # kp + vp blocks
               + D * gdk * cs + gdk * 4         # wq + bq blocks
               + gdk * D * cs + D * 4)          # wo + bo blocks
    est += 2 * block_q * D * jnp.dtype(out_dtype).itemsize      # output block
    if not acc_in_out:
        est += block_q * D * 4                                   # acc scratch
    est += 3 * block_q * Sk * 4 + 3 * block_q * gdk * 4          # softmax / ctx temps
    vmem_limit = int(min(max(2 * est, 32 << 20), 64 << 20))

    kernel = functools.partial(
        _mha_kernel,
        G=G, dk=dk,
        inv_sqrt_dk=1.0 / math.sqrt(dk),
        mxu_dtype=compute_dtype,
        approx_recip=(compute_dtype == jnp.dtype(jnp.bfloat16)),
        acc_in_out=acc_in_out,
    )

    q_spec = pl.BlockSpec((1, block_q, D), lambda b, qi, g: (b, qi, 0))
    kv_spec = pl.BlockSpec((1, 1, Sk, gdk), lambda b, qi, g: (b, g, 0, 0))
    wq_spec = pl.BlockSpec((1, D, gdk), lambda b, qi, g: (g, 0, 0))
    bq_spec = pl.BlockSpec((1, 1, gdk), lambda b, qi, g: (g, 0, 0))
    wo_spec = pl.BlockSpec((1, gdk, D), lambda b, qi, g: (g, 0, 0))
    bo_spec = pl.BlockSpec((1, D), lambda b, qi, g: (0, 0))
    o_spec = pl.BlockSpec((1, block_q, D), lambda b, qi, g: (b, qi, 0))

    scratch_shapes = [] if acc_in_out else [pltpu.VMEM((block_q, D), jnp.float32)]

    return pl.pallas_call(
        kernel,
        out_shape=jax.ShapeDtypeStruct((B, Sq, D), out_dtype),
        grid=(B, n_q, NG),
        in_specs=[q_spec, kv_spec, kv_spec, wq_spec, bq_spec, wo_spec, bo_spec],
        out_specs=o_spec,
        scratch_shapes=scratch_shapes,
        compiler_params=pltpu.CompilerParams(
            dimension_semantics=("parallel", "parallel", "arbitrary"),
            vmem_limit_bytes=vmem_limit),
    )(q, kp, vp, wq_g, bq_g, wo_g, bo_r)


def _reference(query, key, value, params, num_heads):
    """Pure-JAX reference matching the PyTorch module."""
    wq, bq, wk, bk, wv, bv, wo, bo = params
    B, Sq, D = query.shape
    d_k = D // num_heads

    def split(x):
        return x.reshape(x.shape[0], x.shape[1], num_heads, d_k).transpose(0, 2, 1, 3)

    Q = split(query @ wq.T + bq.reshape(-1))
    K = split(key @ wk.T + bk.reshape(-1))
    V = split(value @ wv.T + bv.reshape(-1))
    scores = jnp.einsum("bhqd,bhkd->bhqk", Q, K) / math.sqrt(d_k)
    attn = jax.nn.softmax(scores, axis=-1)
    ctx = jnp.einsum("bhqk,bhkd->bhqd", attn, V)
    ctx = ctx.transpose(0, 2, 1, 3).reshape(B, Sq, D)
    return ctx @ wo.T + bo.reshape(-1)


if __name__ == "__main__":
    batch, seq, d_model, num_heads = 2, 8, 32, 4

    key0 = jax.random.PRNGKey(0)
    keys = jax.random.split(key0, 12)

    scale = 1.0 / math.sqrt(d_model)
    # nn.Linear parameters: weight (d_model, d_model), bias stored as (1, d_model)
    wq = jax.random.uniform(keys[0], (d_model, d_model), jnp.float32, -scale, scale)
    bq = jax.random.uniform(keys[1], (1, d_model), jnp.float32, -scale, scale)
    wk = jax.random.uniform(keys[2], (d_model, d_model), jnp.float32, -scale, scale)
    bk = jax.random.uniform(keys[3], (1, d_model), jnp.float32, -scale, scale)
    wv = jax.random.uniform(keys[4], (d_model, d_model), jnp.float32, -scale, scale)
    bv = jax.random.uniform(keys[5], (1, d_model), jnp.float32, -scale, scale)
    wo = jax.random.uniform(keys[6], (d_model, d_model), jnp.float32, -scale, scale)
    bo = jax.random.uniform(keys[7], (1, d_model), jnp.float32, -scale, scale)
    params = (wq, bq, wk, bk, wv, bv, wo, bo)

    q = jax.random.normal(keys[8], (batch, seq, d_model), jnp.float32)
    k = jax.random.normal(keys[9], (batch, seq, d_model), jnp.float32)
    v = jax.random.normal(keys[10], (batch, seq, d_model), jnp.float32)

    ref = _reference(q, k, v, params, num_heads)

    # Exact-semantics path (f32 MXU operands).
    out_f32 = multi_head_attention(q, k, v, params, num_heads, compute_dtype=jnp.float32)
    out_f32 = jax.block_until_ready(out_f32)
    assert out_f32.shape == (batch, seq, d_model)
    assert jnp.allclose(out_f32, ref, atol=1e-4, rtol=1e-4), "f32 kernel mismatch vs reference"

    # Performance path (bf16 MXU operands, f32 accumulation + f32 softmax) — default.
    out_bf16 = multi_head_attention(q, k, v, params, num_heads, compute_dtype=jnp.bfloat16)
    out_bf16 = jax.block_until_ready(out_bf16)
    assert out_bf16.shape == (batch, seq, d_model)
    assert jnp.allclose(out_bf16, ref, atol=3e-2, rtol=3e-2), "bf16 kernel mismatch vs reference"

    print("KERNEL_OK")
</pallas_src>

<mosaic_0001>
module attributes {stable_mosaic.version = 11 : i64} {
  func.func @_mha_kernel(%arg0: i32, %arg1: i32, %arg2: i32, %arg3: memref<1x8x32xf32, #tpu.memory_space<vmem>>, %arg4: memref<1x1x8x32xf32, #tpu.memory_space<vmem>>, %arg5: memref<1x1x8x32xf32, #tpu.memory_space<vmem>>, %arg6: memref<1x32x32xf32, #tpu.memory_space<vmem>>, %arg7: memref<1x1x32xf32, #tpu.memory_space<vmem>>, %arg8: memref<1x32x32xf32, #tpu.memory_space<vmem>>, %arg9: memref<1x32xf32, #tpu.memory_space<vmem>>, %arg10: memref<1x8x32xf32, #tpu.memory_space<vmem>>) attributes {dimension_semantics = [#tpu.dimension_semantics<parallel>, #tpu.dimension_semantics<parallel>, #tpu.dimension_semantics<arbitrary>], iteration_bounds = array<i64: 2, 1, 1>, scalar_prefetch = 0 : i64, scratch_operands = 0 : i64, tpu.core_type = #tpu.core_type<tc>, window_params = [{transform_indices = @transform_0, window_bounds = array<i64: 1, 8, 32>}, {transform_indices = @transform_1, window_bounds = array<i64: 1, 1, 8, 32>}, {transform_indices = @transform_2, window_bounds = array<i64: 1, 1, 8, 32>}, {transform_indices = @transform_3, window_bounds = array<i64: 1, 32, 32>}, {transform_indices = @transform_4, window_bounds = array<i64: 1, 1, 32>}, {transform_indices = @transform_5, window_bounds = array<i64: 1, 32, 32>}, {pipeline_mode = #tpu.pipeline_mode<synchronous>, transform_indices = @transform_6, window_bounds = array<i64: 1, 32>}, {transform_indices = @transform_7, window_bounds = array<i64: 1, 8, 32>}]} {
    %c0 = arith.constant 0 : index
    %c0_0 = arith.constant 0 : index
    %c0_1 = arith.constant 0 : index
    %0 = vector.load %arg3[%c0, %c0_0, %c0_1] : memref<1x8x32xf32, #tpu.memory_space<vmem>>, vector<1x8x32xf32>
    %1 = vector.shape_cast %0 : vector<1x8x32xf32> to vector<8x32xf32>
    %c0_2 = arith.constant 0 : index
    %c0_3 = arith.constant 0 : index
    %c0_4 = arith.constant 0 : index
    %c0_5 = arith.constant 0 : index
    %2 = vector.load %arg4[%c0_2, %c0_3, %c0_4, %c0_5] : memref<1x1x8x32xf32, #tpu.memory_space<vmem>>, vector<1x1x8x32xf32>
    %3 = vector.shape_cast %2 : vector<1x1x8x32xf32> to vector<8x32xf32>
    %c0_6 = arith.constant 0 : index
    %c0_7 = arith.constant 0 : index
    %c0_8 = arith.constant 0 : index
    %c0_9 = arith.constant 0 : index
    %4 = vector.load %arg5[%c0_6, %c0_7, %c0_8, %c0_9] : memref<1x1x8x32xf32, #tpu.memory_space<vmem>>, vector<1x1x8x32xf32>
    %5 = vector.shape_cast %4 : vector<1x1x8x32xf32> to vector<8x32xf32>
    %c0_10 = arith.constant 0 : index
    %c0_11 = arith.constant 0 : index
    %c0_12 = arith.constant 0 : index
    %6 = vector.load %arg6[%c0_10, %c0_11, %c0_12] : memref<1x32x32xf32, #tpu.memory_space<vmem>>, vector<1x32x32xf32>
    %7 = vector.shape_cast %6 : vector<1x32x32xf32> to vector<32x32xf32>
    %c0_13 = arith.constant 0 : index
    %c0_14 = arith.constant 0 : index
    %c0_15 = arith.constant 0 : index
    %8 = vector.load %arg8[%c0_13, %c0_14, %c0_15] : memref<1x32x32xf32, #tpu.memory_space<vmem>>, vector<1x32x32xf32>
    %9 = vector.shape_cast %8 : vector<1x32x32xf32> to vector<32x32xf32>
    %cst = arith.constant dense<0.000000e+00> : vector<8x32xf32>
    %10 = tpu.matmul %1, %7, %cst {dimension_numbers = #tpu.dot_dimension_numbers<[1], [0], [0], [1], [0, 0, 1, 1], [], []>} : vector<8x32xf32>, vector<32x32xf32>, vector<8x32xf32> -> vector<8x32xf32>
    %c0_16 = arith.constant 0 : index
    %c0_17 = arith.constant 0 : index
    %c0_18 = arith.constant 0 : index
    %11 = vector.load %arg7[%c0_16, %c0_17, %c0_18] : memref<1x1x32xf32, #tpu.memory_space<vmem>>, vector<1x1x32xf32>
    %12 = vector.shape_cast %11 : vector<1x1x32xf32> to vector<1x32xf32>
    %13 = vector.broadcast %12 : vector<1x32xf32> to vector<8x32xf32>
    %14 = arith.addf %10, %13 : vector<8x32xf32>
    %cst_19 = arith.constant 0.353553385 : f32
    %15 = vector.broadcast %cst_19 : f32 to vector<8x32xf32>
    %16 = arith.mulf %14, %15 : vector<8x32xf32>
    %17 = vector.extract_strided_slice %16 {offsets = [0, 0], sizes = [8, 8], strides = [1, 1]} : vector<8x32xf32> to vector<8x8xf32>
    %18 = vector.extract_strided_slice %3 {offsets = [0, 0], sizes = [8, 8], strides = [1, 1]} : vector<8x32xf32> to vector<8x8xf32>
    %cst_20 = arith.constant dense<0.000000e+00> : vector<8x8xf32>
    %19 = tpu.matmul %17, %18, %cst_20 {dimension_numbers = #tpu.dot_dimension_numbers<[1], [1], [0], [0], [0, 0, 1, 0], [], []>} : vector<8x8xf32>, vector<8x8xf32>, vector<8x8xf32> -> vector<8x8xf32>
    %cst_21 = arith.constant dense<0xFF800000> : vector<8xf32>
    %20 = vector.multi_reduction <maximumf>, %19, %cst_21 [1] : vector<8x8xf32> to vector<8xf32>
    %21 = vector.shape_cast %20 : vector<8xf32> to vector<8x1xf32>
    %22 = vector.broadcast %21 : vector<8x1xf32> to vector<8x8xf32>
    %23 = arith.subf %19, %22 : vector<8x8xf32>
    %24 = math.exp %23 : vector<8x8xf32>
    %cst_22 = arith.constant dense<0.000000e+00> : vector<8xf32>
    %25 = vector.multi_reduction <add>, %24, %cst_22 [1] : vector<8x8xf32> to vector<8xf32>
    %26 = vector.shape_cast %25 : vector<8xf32> to vector<8x1xf32>
    %27 = tpu.reciprocal %26 : vector<8x1xf32> -> vector<8x1xf32>
    %28 = vector.broadcast %27 : vector<8x1xf32> to vector<8x8xf32>
    %29 = arith.mulf %24, %28 : vector<8x8xf32>
    %30 = vector.extract_strided_slice %5 {offsets = [0, 0], sizes = [8, 8], strides = [1, 1]} : vector<8x32xf32> to vector<8x8xf32>
    %cst_23 = arith.constant dense<0.000000e+00> : vector<8x8xf32>
    %31 = tpu.matmul %29, %30, %cst_23 {dimension_numbers = #tpu.dot_dimension_numbers<[1], [0], [0], [1], [0, 0, 1, 1], [], []>} : vector<8x8xf32>, vector<8x8xf32>, vector<8x8xf32> -> vector<8x8xf32>
    %32 = vector.extract_strided_slice %16 {offsets = [0, 8], sizes = [8, 8], strides = [1, 1]} : vector<8x32xf32> to vector<8x8xf32>
    %33 = vector.extract_strided_slice %3 {offsets = [0, 8], sizes = [8, 8], strides = [1, 1]} : vector<8x32xf32> to vector<8x8xf32>
    %cst_24 = arith.constant dense<0.000000e+00> : vector<8x8xf32>
    %34 = tpu.matmul %32, %33, %cst_24 {dimension_numbers = #tpu.dot_dimension_numbers<[1], [1], [0], [0], [0, 0, 1, 0], [], []>} : vector<8x8xf32>, vector<8x8xf32>, vector<8x8xf32> -> vector<8x8xf32>
    %cst_25 = arith.constant dense<0xFF800000> : vector<8xf32>
    %35 = vector.multi_reduction <maximumf>, %34, %cst_25 [1] : vector<8x8xf32> to vector<8xf32>
    %36 = vector.shape_cast %35 : vector<8xf32> to vector<8x1xf32>
    %37 = vector.broadcast %36 : vector<8x1xf32> to vector<8x8xf32>
    %38 = arith.subf %34, %37 : vector<8x8xf32>
    %39 = math.exp %38 : vector<8x8xf32>
    %cst_26 = arith.constant dense<0.000000e+00> : vector<8xf32>
    %40 = vector.multi_reduction <add>, %39, %cst_26 [1] : vector<8x8xf32> to vector<8xf32>
    %41 = vector.shape_cast %40 : vector<8xf32> to vector<8x1xf32>
    %42 = tpu.reciprocal %41 : vector<8x1xf32> -> vector<8x1xf32>
    %43 = vector.broadcast %42 : vector<8x1xf32> to vector<8x8xf32>
    %44 = arith.mulf %39, %43 : vector<8x8xf32>
    %45 = vector.extract_strided_slice %5 {offsets = [0, 8], sizes = [8, 8], strides = [1, 1]} : vector<8x32xf32> to vector<8x8xf32>
    %cst_27 = arith.constant dense<0.000000e+00> : vector<8x8xf32>
    %46 = tpu.matmul %44, %45, %cst_27 {dimension_numbers = #tpu.dot_dimension_numbers<[1], [0], [0], [1], [0, 0, 1, 1], [], []>} : vector<8x8xf32>, vector<8x8xf32>, vector<8x8xf32> -> vector<8x8xf32>
    %47 = vector.extract_strided_slice %16 {offsets = [0, 16], sizes = [8, 8], strides = [1, 1]} : vector<8x32xf32> to vector<8x8xf32>
    %48 = vector.extract_strided_slice %3 {offsets = [0, 16], sizes = [8, 8], strides = [1, 1]} : vector<8x32xf32> to vector<8x8xf32>
    %cst_28 = arith.constant dense<0.000000e+00> : vector<8x8xf32>
    %49 = tpu.matmul %47, %48, %cst_28 {dimension_numbers = #tpu.dot_dimension_numbers<[1], [1], [0], [0], [0, 0, 1, 0], [], []>} : vector<8x8xf32>, vector<8x8xf32>, vector<8x8xf32> -> vector<8x8xf32>
    %cst_29 = arith.constant dense<0xFF800000> : vector<8xf32>
    %50 = vector.multi_reduction <maximumf>, %49, %cst_29 [1] : vector<8x8xf32> to vector<8xf32>
    %51 = vector.shape_cast %50 : vector<8xf32> to vector<8x1xf32>
    %52 = vector.broadcast %51 : vector<8x1xf32> to vector<8x8xf32>
    %53 = arith.subf %49, %52 : vector<8x8xf32>
    %54 = math.exp %53 : vector<8x8xf32>
    %cst_30 = arith.constant dense<0.000000e+00> : vector<8xf32>
    %55 = vector.multi_reduction <add>, %54, %cst_30 [1] : vector<8x8xf32> to vector<8xf32>
    %56 = vector.shape_cast %55 : vector<8xf32> to vector<8x1xf32>
    %57 = tpu.reciprocal %56 : vector<8x1xf32> -> vector<8x1xf32>
    %58 = vector.broadcast %57 : vector<8x1xf32> to vector<8x8xf32>
    %59 = arith.mulf %54, %58 : vector<8x8xf32>
    %60 = vector.extract_strided_slice %5 {offsets = [0, 16], sizes = [8, 8], strides = [1, 1]} : vector<8x32xf32> to vector<8x8xf32>
    %cst_31 = arith.constant dense<0.000000e+00> : vector<8x8xf32>
    %61 = tpu.matmul %59, %60, %cst_31 {dimension_numbers = #tpu.dot_dimension_numbers<[1], [0], [0], [1], [0, 0, 1, 1], [], []>} : vector<8x8xf32>, vector<8x8xf32>, vector<8x8xf32> -> vector<8x8xf32>
    %62 = vector.extract_strided_slice %16 {offsets = [0, 24], sizes = [8, 8], strides = [1, 1]} : vector<8x32xf32> to vector<8x8xf32>
    %63 = vector.extract_strided_slice %3 {offsets = [0, 24], sizes = [8, 8], strides = [1, 1]} : vector<8x32xf32> to vector<8x8xf32>
    %cst_32 = arith.constant dense<0.000000e+00> : vector<8x8xf32>
    %64 = tpu.matmul %62, %63, %cst_32 {dimension_numbers = #tpu.dot_dimension_numbers<[1], [1], [0], [0], [0, 0, 1, 0], [], []>} : vector<8x8xf32>, vector<8x8xf32>, vector<8x8xf32> -> vector<8x8xf32>
    %cst_33 = arith.constant dense<0xFF800000> : vector<8xf32>
    %65 = vector.multi_reduction <maximumf>, %64, %cst_33 [1] : vector<8x8xf32> to vector<8xf32>
    %66 = vector.shape_cast %65 : vector<8xf32> to vector<8x1xf32>
    %67 = vector.broadcast %66 : vector<8x1xf32> to vector<8x8xf32>
    %68 = arith.subf %64, %67 : vector<8x8xf32>
    %69 = math.exp %68 : vector<8x8xf32>
    %cst_34 = arith.constant dense<0.000000e+00> : vector<8xf32>
    %70 = vector.multi_reduction <add>, %69, %cst_34 [1] : vector<8x8xf32> to vector<8xf32>
    %71 = vector.shape_cast %70 : vector<8xf32> to vector<8x1xf32>
    %72 = tpu.reciprocal %71 : vector<8x1xf32> -> vector<8x1xf32>
    %73 = vector.broadcast %72 : vector<8x1xf32> to vector<8x8xf32>
    %74 = arith.mulf %69, %73 : vector<8x8xf32>
    %75 = vector.extract_strided_slice %5 {offsets = [0, 24], sizes = [8, 8], strides = [1, 1]} : vector<8x32xf32> to vector<8x8xf32>
    %cst_35 = arith.constant dense<0.000000e+00> : vector<8x8xf32>
    %76 = tpu.matmul %74, %75, %cst_35 {dimension_numbers = #tpu.dot_dimension_numbers<[1], [0], [0], [1], [0, 0, 1, 1], [], []>} : vector<8x8xf32>, vector<8x8xf32>, vector<8x8xf32> -> vector<8x8xf32>
    %77 = tpu.concatenate %31, %46, %61, %76 in 1 : vector<8x8xf32>, vector<8x8xf32>, vector<8x8xf32>, vector<8x8xf32> -> vector<8x32xf32>
    %cst_36 = arith.constant dense<0.000000e+00> : vector<8x32xf32>
    %78 = tpu.matmul %77, %9, %cst_36 {dimension_numbers = #tpu.dot_dimension_numbers<[1], [0], [0], [1], [0, 0, 1, 1], [], []>} : vector<8x32xf32>, vector<32x32xf32>, vector<8x32xf32> -> vector<8x32xf32>
    %c0_i32 = arith.constant 0 : i32
    %79 = arith.cmpi eq, %arg2, %c0_i32 : i32
    %80 = arith.extui %79 : i1 to i32
    %c0_i32_37 = arith.constant 0 : i32
    %81 = arith.cmpi ne, %80, %c0_i32_37 : i32
    scf.if %81 {
      %c0_42 = arith.constant 0 : index
      %c0_43 = arith.constant 0 : index
      %c0_44 = arith.constant 0 : index
      %88 = vector.load %arg10[%c0_42, %c0_43, %c0_44] : memref<1x8x32xf32, #tpu.memory_space<vmem>>, vector<1x8x32xf32>
      %89 = vector.shape_cast %88 : vector<1x8x32xf32> to vector<8x32xf32>
      %90 = vector.shape_cast %78 : vector<8x32xf32> to vector<1x8x32xf32>
      tpu.vector_store %arg10[%c0_42, %c0_43, %c0_44], %90 {strides = array<i32>} : memref<1x8x32xf32, #tpu.memory_space<vmem>>, vector<1x8x32xf32>,
    } else {
    }
    %c0_i32_38 = arith.constant 0 : i32
    %82 = arith.cmpi ne, %arg2, %c0_i32_38 : i32
    %83 = arith.extui %82 : i1 to i32
    %c0_i32_39 = arith.constant 0 : i32
    %84 = arith.cmpi ne, %83, %c0_i32_39 : i32
    scf.if %84 {
      %c0_42 = arith.constant 0 : index
      %c0_43 = arith.constant 0 : index
      %c0_44 = arith.constant 0 : index
      %88 = vector.load %arg10[%c0_42, %c0_43, %c0_44] : memref<1x8x32xf32, #tpu.memory_space<vmem>>, vector<1x8x32xf32>
      %89 = vector.shape_cast %88 : vector<1x8x32xf32> to vector<8x32xf32>
      %90 = arith.addf %89, %78 : vector<8x32xf32>
      %c0_45 = arith.constant 0 : index
      %c0_46 = arith.constant 0 : index
      %c0_47 = arith.constant 0 : index
      %91 = vector.load %arg10[%c0_45, %c0_46, %c0_47] : memref<1x8x32xf32, #tpu.memory_space<vmem>>, vector<1x8x32xf32>
      %92 = vector.shape_cast %91 : vector<1x8x32xf32> to vector<8x32xf32>
      %93 = vector.shape_cast %90 : vector<8x32xf32> to vector<1x8x32xf32>
      tpu.vector_store %arg10[%c0_45, %c0_46, %c0_47], %93 {strides = array<i32>} : memref<1x8x32xf32, #tpu.memory_space<vmem>>, vector<1x8x32xf32>,
    } else {
    }
    %c0_i32_40 = arith.constant 0 : i32
    %85 = arith.cmpi eq, %arg2, %c0_i32_40 : i32
    %86 = arith.extui %85 : i1 to i32
    %c0_i32_41 = arith.constant 0 : i32
    %87 = arith.cmpi ne, %86, %c0_i32_41 : i32
    scf.if %87 {
      %c0_42 = arith.constant 0 : index
      %c0_43 = arith.constant 0 : index
      %c0_44 = arith.constant 0 : index
      %88 = vector.load %arg10[%c0_42, %c0_43, %c0_44] : memref<1x8x32xf32, #tpu.memory_space<vmem>>, vector<1x8x32xf32>
      %89 = vector.shape_cast %88 : vector<1x8x32xf32> to vector<8x32xf32>
      %c0_45 = arith.constant 0 : index
      %c0_46 = arith.constant 0 : index
      %90 = vector.load %arg9[%c0_45, %c0_46] : memref<1x32xf32, #tpu.memory_space<vmem>>, vector<1x32xf32>
      %91 = vector.broadcast %90 : vector<1x32xf32> to vector<8x32xf32>
      %92 = arith.addf %89, %91 : vector<8x32xf32>
      %c0_47 = arith.constant 0 : index
      %c0_48 = arith.constant 0 : index
      %c0_49 = arith.constant 0 : index
      %93 = vector.load %arg10[%c0_47, %c0_48, %c0_49] : memref<1x8x32xf32, #tpu.memory_space<vmem>>, vector<1x8x32xf32>
      %94 = vector.shape_cast %93 : vector<1x8x32xf32> to vector<8x32xf32>
      %95 = vector.shape_cast %92 : vector<8x32xf32> to vector<1x8x32xf32>
      tpu.vector_store %arg10[%c0_47, %c0_48, %c0_49], %95 {strides = array<i32>} : memref<1x8x32xf32, #tpu.memory_space<vmem>>, vector<1x8x32xf32>,
    } else {
    }
    return
  }
  func.func @transform_0(%arg0: i32, %arg1: i32, %arg2: i32) -> (i32, i32, i32) {
    %c0_i32 = arith.constant 0 : i32
    %c0_i32_0 = arith.constant 0 : i32
    return %arg0, %arg1, %c0_i32 : i32, i32, i32
  }
  func.func @transform_1(%arg0: i32, %arg1: i32, %arg2: i32) -> (i32, i32, i32, i32) {
    %c0_i32 = arith.constant 0 : i32
    %c0_i32_0 = arith.constant 0 : i32
    %c0_i32_1 = arith.constant 0 : i32
    return %arg0, %arg2, %c0_i32, %c0_i32_0 : i32, i32, i32, i32
  }
  func.func @transform_2(%arg0: i32, %arg1: i32, %arg2: i32) -> (i32, i32, i32, i32) {
    %c0_i32 = arith.constant 0 : i32
    %c0_i32_0 = arith.constant 0 : i32
    %c0_i32_1 = arith.constant 0 : i32
    return %arg0, %arg2, %c0_i32, %c0_i32_0 : i32, i32, i32, i32
  }
  func.func @transform_3(%arg0: i32, %arg1: i32, %arg2: i32) -> (i32, i32, i32) {
    %c0_i32 = arith.constant 0 : i32
    %c0_i32_0 = arith.constant 0 : i32
    %c0_i32_1 = arith.constant 0 : i32
    return %arg2, %c0_i32, %c0_i32_0 : i32, i32, i32
  }
  func.func @transform_4(%arg0: i32, %arg1: i32, %arg2: i32) -> (i32, i32, i32) {
    %c0_i32 = arith.constant 0 : i32
    %c0_i32_0 = arith.constant 0 : i32
    %c0_i32_1 = arith.constant 0 : i32
    return %arg2, %c0_i32, %c0_i32_0 : i32, i32, i32
  }
  func.func @transform_5(%arg0: i32, %arg1: i32, %arg2: i32) -> (i32, i32, i32) {
    %c0_i32 = arith.constant 0 : i32
    %c0_i32_0 = arith.constant 0 : i32
    %c0_i32_1 = arith.constant 0 : i32
    return %arg2, %c0_i32, %c0_i32_0 : i32, i32, i32
  }
  func.func @transform_6(%arg0: i32, %arg1: i32, %arg2: i32) -> (i32, i32) {
    %c0_i32 = arith.constant 0 : i32
    %c0_i32_0 = arith.constant 0 : i32
    %c0_i32_1 = arith.constant 0 : i32
    return %c0_i32, %c0_i32_0 : i32, i32
  }
  func.func @transform_7(%arg0: i32, %arg1: i32, %arg2: i32) -> (i32, i32, i32) {
    %c0_i32 = arith.constant 0 : i32
    %c0_i32_0 = arith.constant 0 : i32
    return %arg0, %arg1, %c0_i32 : i32, i32, i32
  }
}

</mosaic_0001>

<llo_original>
// kernel: tpu_custom_call.1
$region0: #{tpu_custom_call.1}
  #allocation0 [shape = 'u32[]', space=smem, size = 0x4, offset = 0x4, fixed_abs, tag = 'smem constant byte address 0x4 - core index']
  #allocation1 [shape = 'u32[144,128]{1,0:T(1,128)}', space=vmem, size = 0x12000, scoped, tag = 'internal scratch']
  %s0 = inlined_call_operand.hbm [shape: f32[2,8,32], index: 0, kind: input, shape index: {}]
  %s1 = inlined_call_operand.hbm [shape: f32[2,1,8,32], index: 1, kind: input, shape index: {}]
  %s2 = inlined_call_operand.hbm [shape: f32[2,1,8,32], index: 2, kind: input, shape index: {}]
  %s3 = inlined_call_operand.hbm [shape: f32[1,32,32], index: 3, kind: input, shape index: {}]
  %s4 = inlined_call_operand.vmem [shape: f32[1,1,32], index: 4, kind: input, shape index: {}]
  %s5 = inlined_call_operand.hbm [shape: f32[1,32,32], index: 5, kind: input, shape index: {}]
  %s6 = inlined_call_operand.vmem [shape: f32[1,32], index: 6, kind: input, shape index: {}]
  %s7 = inlined_call_operand.hbm [shape: f32[2,8,32], index: 7, kind: output, shape index: {}]
  %s8 = sld [smem:[#allocation0]]
  $region93: #{tpu_custom_call.1} parent=0
    _
  %s10 = ssub.s32 1, %s8
  %s11 = scalar_select 0, %s10, %s8
  $region1: #{tpu_custom_call.1} parent=0
    #allocation2 [shape = 'u8[8192]{0}', space=vmem, size = 0x2000, scoped, tag = 'input window, operand 0']
    #allocation3 [shape = 's32[2]{0}', space=sflag, size = 0x8, scoped, tag = 'scoped memory for tpu_custom_call.1']
    #allocation4 [shape = 's32[2]{0}', space=sflag, size = 0x8, scoped, tag = 'scoped memory for tpu_custom_call.1']
    #allocation5 [shape = 'u8[8192]{0}', space=vmem, size = 0x2000, scoped, tag = 'input window, operand 1']
    #allocation6 [shape = 's32[2]{0}', space=sflag, size = 0x8, scoped, tag = 'scoped memory for tpu_custom_call.1']
    #allocation7 [shape = 'u8[8192]{0}', space=vmem, size = 0x2000, scoped, tag = 'input window, operand 2']
    #allocation8 [shape = 'u8[16384]{0}', space=vmem, size = 0x4000, scoped, tag = 'input window, operand 3, single buffered']
    #allocation9 [shape = 's32[1]{0}', space=sflag, size = 0x4, scoped, tag = 'scoped memory for tpu_custom_call.1']
    #allocation10 [shape = 'u8[16384]{0}', space=vmem, size = 0x4000, scoped, tag = 'input window, operand 5, single buffered']
    #allocation11 [shape = 'u8[8192]{0}', space=vmem, size = 0x2000, scoped, tag = 'output window, operand 0']
    %12 = vsyncpa [#allocation3], 0
    %s13 = scalar_lea.sflag [#allocation3], 1
    %14 = vsyncpa %s13, 0
    %15 = vsyncpa [#allocation6], 0
    %s16 = scalar_lea.sflag [#allocation6], 1
    %17 = vsyncpa %s16, 0
    %18 = vsyncpa [#allocation9], 0
    %19 = vsyncpa [#allocation4], 0
    %s20 = scalar_lea.sflag [#allocation4], 1
    %21 = vsyncpa %s20, 0
    loop: start=0, step=1, limit=4
    $region2: #{tpu_custom_call.1} parent=1 // loop_pre_header
      _
    $region3: #{tpu_custom_call.1} parent=1 // loop_header
      %s23 = sphi 0, %s27
      %p24 = scmp.ge.s32.totalorder %s23, 4
      %s30 = sphi 0, %s49
      %s31 = sphi 0, %s45
      %s32 = sphi 0, %s41
      %s33 = sphi 0, %s30
      %s34 = sphi 0, %s31
      %s35 = sphi 0, %s32
      %s36 = sphi 0, %s33
      %s37 = sphi 0, %s34
      %s38 = sphi 0, %s35
      %s54 = sphi 0, %s56
      %s57 = sphi 0, %s54
      %s58 = sphi 0, %s57
      %s74 = sphi 0, %s58
      %s82 = sphi 0, %s84
      %s85 = sphi 0, %s82
      %s86 = sphi 0, %s85
      %s102 = sphi 0, %s86
      %s110 = sphi 0, %s112
      %s113 = sphi 0, %s110
      %s114 = sphi 0, %s113
      %s130 = sphi 0, %s114
      %s136 = sphi 0, %s138
      %s139 = sphi 0, %s136
      %s140 = sphi 0, %s139
      %s156 = sphi 0, %s140
      %s162 = sphi 0, %s164
      %s165 = sphi 0, %s162
      %s166 = sphi 0, %s165
      %s182 = sphi 0, %s166
      %s188 = sphi 0, %s190
      %s191 = sphi 0, %s188
      %s192 = sphi 0, %s191
      %s208 = sphi 0, %s192
      %s212 = sphi 0, %s212
      %s214 = sphi 0, %s212
      %s215 = sphi 0, %s214
      %s229 = sphi 0, %s215
      %s237 = sphi 0, %s239
      %s240 = sphi 0, %s237
      %s241 = sphi 0, %s240
      %s257 = sphi 0, %s241
    $region4: #{tpu_custom_call.1} parent=1 // loop_header_branch
      %26 = sbr.rel (%p24) target = $region8
    $region5: #{tpu_custom_call.1} parent=1 // loop_body
      %s28 = ssub.s32 %s23, 1
      %s29 = ssub.s32 %s23, 2
      %s39 = sadd.s32 1, %s32
      %p40 = scmp.ge.s32.totalorder %s39, 1
      %s41 = scalar_select %p40, 0, %s39
      %s42 = sadd.s32 1, %s31
      %s43 = scalar_select %p40, %s42, %s31
      %p44 = scmp.ge.s32.totalorder %s43, 1
      %s45 = scalar_select %p44, 0, %s43
      %s46 = sadd.s32 1, %s30
      %s47 = scalar_select %p44, %s46, %s30
      %p48 = scmp.ge.s32.totalorder %s47, 2
      %s49 = scalar_select %p48, 0, %s47
      %s50 = ssub.s32 %s30, %s49
      %s51 = ssub.s32 %s31, %s45
      %s52 = sor.u32 %s50, %s51
      %p53 = scmp.eq.s32.totalorder %s52, 0
      %s55 = sadd.s32 %s54, 1
      %s56 = scalar_select %p53, %s54, %s55
      %p59 = pneg %p53
      %p60 = scmp.eq.s32.totalorder %s23, 1
      %p61 = por %p59, %p60
      %p62 = scmp.ne.s32.totalorder %s54, %s57
      %p63 = scmp.eq.s32.totalorder %s23, 0
      %p64 = por %p62, %p63
      %p65 = scmp.ne.s32.totalorder %s54, %s57
      %p66 = scmp.eq.s32.totalorder %s28, 1
      %p67 = por %p65, %p66
      %p68 = scmp.ne.s32.totalorder %s57, %s58
      %p69 = scmp.eq.s32.totalorder %s28, 0
      %p70 = por %p68, %p69
      %p71 = scmp.ne.s32.totalorder %s57, %s58
      %p72 = scmp.eq.s32.totalorder %s29, 1
      %p73 = por %p71, %p72
      %p75 = scmp.ne.s32.totalorder %s58, %s74
      %p76 = scmp.eq.s32.totalorder %s29, 0
      %p77 = por %p75, %p76
      %s78 = ssub.s32 %s30, %s49
      %s79 = ssub.s32 %s32, %s41
      %s80 = sor.u32 %s78, %s79
      %p81 = scmp.eq.s32.totalorder %s80, 0
      %s83 = sadd.s32 %s82, 1
      %s84 = scalar_select %p81, %s82, %s83
      %p87 = pneg %p81
      %p88 = scmp.eq.s32.totalorder %s23, 1
      %p89 = por %p87, %p88
      %p90 = scmp.ne.s32.totalorder %s82, %s85
      %p91 = scmp.eq.s32.totalorder %s23, 0
      %p92 = por %p90, %p91
      %p93 = scmp.ne.s32.totalorder %s82, %s85
      %p94 = scmp.eq.s32.totalorder %s28, 1
      %p95 = por %p93, %p94
      %p96 = scmp.ne.s32.totalorder %s85, %s86
      %p97 = scmp.eq.s32.totalorder %s28, 0
      %p98 = por %p96, %p97
      %p99 = scmp.ne.s32.totalorder %s85, %s86
      %p100 = scmp.eq.s32.totalorder %s29, 1
      %p101 = por %p99, %p100
      %p103 = scmp.ne.s32.totalorder %s86, %s102
      %p104 = scmp.eq.s32.totalorder %s29, 0
      %p105 = por %p103, %p104
      %s106 = ssub.s32 %s30, %s49
      %s107 = ssub.s32 %s32, %s41
      %s108 = sor.u32 %s106, %s107
      %p109 = scmp.eq.s32.totalorder %s108, 0
      %s111 = sadd.s32 %s110, 1
      %s112 = scalar_select %p109, %s110, %s111
      %p115 = pneg %p109
      %p116 = scmp.eq.s32.totalorder %s23, 1
      %p117 = por %p115, %p116
      %p118 = scmp.ne.s32.totalorder %s110, %s113
      %p119 = scmp.eq.s32.totalorder %s23, 0
      %p120 = por %p118, %p119
      %p121 = scmp.ne.s32.totalorder %s110, %s113
      %p122 = scmp.eq.s32.totalorder %s28, 1
      %p123 = por %p121, %p122
      %p124 = scmp.ne.s32.totalorder %s113, %s114
      %p125 = scmp.eq.s32.totalorder %s28, 0
      %p126 = por %p124, %p125
      %p127 = scmp.ne.s32.totalorder %s113, %s114
      %p128 = scmp.eq.s32.totalorder %s29, 1
      %p129 = por %p127, %p128
      %p131 = scmp.ne.s32.totalorder %s114, %s130
      %p132 = scmp.eq.s32.totalorder %s29, 0
      %p133 = por %p131, %p132
      %s134 = ssub.s32 %s32, %s41
      %p135 = scmp.eq.s32.totalorder %s134, 0
      %s137 = sadd.s32 %s136, 1
      %s138 = scalar_select %p135, %s136, %s137
      %p141 = pneg %p135
      %p142 = scmp.eq.s32.totalorder %s23, 1
      %p143 = por %p141, %p142
      %p144 = scmp.ne.s32.totalorder %s136, %s139
      %p145 = scmp.eq.s32.totalorder %s23, 0
      %p146 = por %p144, %p145
      %p147 = scmp.ne.s32.totalorder %s136, %s139
      %p148 = scmp.eq.s32.totalorder %s28, 1
      %p149 = por %p147, %p148
      %p150 = scmp.ne.s32.totalorder %s139, %s140
      %p151 = scmp.eq.s32.totalorder %s28, 0
      %p152 = por %p150, %p151
      %p153 = scmp.ne.s32.totalorder %s139, %s140
      %p154 = scmp.eq.s32.totalorder %s29, 1
      %p155 = por %p153, %p154
      %p157 = scmp.ne.s32.totalorder %s140, %s156
      %p158 = scmp.eq.s32.totalorder %s29, 0
      %p159 = por %p157, %p158
      %s160 = ssub.s32 %s32, %s41
      %p161 = scmp.eq.s32.totalorder %s160, 0
      %s163 = sadd.s32 %s162, 1
      %s164 = scalar_select %p161, %s162, %s163
      %p167 = pneg %p161
      %p168 = scmp.eq.s32.totalorder %s23, 1
      %p169 = por %p167, %p168
      %p170 = scmp.ne.s32.totalorder %s162, %s165
      %p171 = scmp.eq.s32.totalorder %s23, 0
      %p172 = por %p170, %p171
      %p173 = scmp.ne.s32.totalorder %s162, %s165
      %p174 = scmp.eq.s32.totalorder %s28, 1
      %p175 = por %p173, %p174
      %p176 = scmp.ne.s32.totalorder %s165, %s166
      %p177 = scmp.eq.s32.totalorder %s28, 0
      %p178 = por %p176, %p177
      %p179 = scmp.ne.s32.totalorder %s165, %s166
      %p180 = scmp.eq.s32.totalorder %s29, 1
      %p181 = por %p179, %p180
      %p183 = scmp.ne.s32.totalorder %s166, %s182
      %p184 = scmp.eq.s32.totalorder %s29, 0
      %p185 = por %p183, %p184
      %s186 = ssub.s32 %s32, %s41
      %p187 = scmp.eq.s32.totalorder %s186, 0
      %s189 = sadd.s32 %s188, 1
      %s190 = scalar_select %p187, %s188, %s189
      %p193 = pneg %p187
      %p194 = scmp.eq.s32.totalorder %s23, 1
      %p195 = por %p193, %p194
      %p196 = scmp.ne.s32.totalorder %s188, %s191
      %p197 = scmp.eq.s32.totalorder %s23, 0
      %p198 = por %p196, %p197
      %p199 = scmp.ne.s32.totalorder %s188, %s191
      %p200 = scmp.eq.s32.totalorder %s28, 1
      %p201 = por %p199, %p200
      %p202 = scmp.ne.s32.totalorder %s191, %s192
      %p203 = scmp.eq.s32.totalorder %s28, 0
      %p204 = por %p202, %p203
      %p205 = scmp.ne.s32.totalorder %s191, %s192
      %p206 = scmp.eq.s32.totalorder %s29, 1
      %p207 = por %p205, %p206
      %p209 = scmp.ne.s32.totalorder %s192, %s208
      %p210 = scmp.eq.s32.totalorder %s29, 0
      %p211 = por %p209, %p210
      %s213 = sadd.s32 %s212, 1
      %p216 = scmp.eq.s32.totalorder %s23, 1
      %p217 = scmp.ne.s32.totalorder %s212, %s214
      %p218 = scmp.eq.s32.totalorder %s23, 0
      %p219 = por %p217, %p218
      %p220 = scmp.ne.s32.totalorder %s212, %s214
      %p221 = scmp.eq.s32.totalorder %s28, 1
      %p222 = por %p220, %p221
      %p223 = scmp.ne.s32.totalorder %s214, %s215
      %p224 = scmp.eq.s32.totalorder %s28, 0
      %p225 = por %p223, %p224
      %p226 = scmp.ne.s32.totalorder %s214, %s215
      %p227 = scmp.eq.s32.totalorder %s29, 1
      %p228 = por %p226, %p227
      %p230 = scmp.ne.s32.totalorder %s215, %s229
      %p231 = scmp.eq.s32.totalorder %s29, 0
      %p232 = por %p230, %p231
      %s233 = ssub.s32 %s30, %s49
      %s234 = ssub.s32 %s31, %s45
      %s235 = sor.u32 %s233, %s234
      %p236 = scmp.eq.s32.totalorder %s235, 0
      %s238 = sadd.s32 %s237, 1
      %s239 = scalar_select %p236, %s237, %s238
      %p242 = pneg %p236
      %p243 = scmp.eq.s32.totalorder %s23, 1
      %p244 = por %p242, %p243
      %p245 = scmp.ne.s32.totalorder %s237, %s240
      %p246 = scmp.eq.s32.totalorder %s23, 0
      %p247 = por %p245, %p246
      %p248 = scmp.ne.s32.totalorder %s237, %s240
      %p249 = scmp.eq.s32.totalorder %s28, 1
      %p250 = por %p248, %p249
      %p251 = scmp.ne.s32.totalorder %s240, %s241
      %p252 = scmp.eq.s32.totalorder %s28, 0
      %p253 = por %p251, %p252
      %p254 = scmp.ne.s32.totalorder %s240, %s241
      %p255 = scmp.eq.s32.totalorder %s29, 1
      %p256 = por %p254, %p255
      %p258 = scmp.ne.s32.totalorder %s241, %s257
      %p259 = scmp.eq.s32.totalorder %s29, 0
      %p260 = por %p258, %p259
      %p261 = scmp.le.s32.totalorder 1, %s23
      %p262 = scmp.lt.s32.totalorder %s23, 3
      %p263 = pnand %p261, %p262
      %p264 = pneg %p263
      // Predicated region
      $region9: #{tpu_custom_call.1} parent=5 // pred_check
        _
      $region10: #{tpu_custom_call.1} parent=5 // pred_check_branch
        %266 = sbr.rel (%p263) target = $region12
      $region11: #{tpu_custom_call.1} parent=5 // pred_region
        %s267 = ssub.s32 %s23, 1
        // Predicated region
        $region13: #{tpu_custom_call.1} parent=11 // pred_check
          %p268 = pneg %p152
        $region14: #{tpu_custom_call.1} parent=11 // pred_check_branch
          %270 = sbr.rel (%p268) target = $region16
        $region15: #{tpu_custom_call.1} parent=11 // pred_region
          %s272 = ssub.s32 512, 512
          %273 = vsyncadd [#allocation9], %s272
          %s274 = smul.addr %s35, 4
          %s275 = smul.addr %s274, 128
          %s276 = scalar_lea.hbm %s3, %s275
          %s277 = sshll.u32 [#allocation8], 4
          %s278 = int_to_ptr.vmem [resolvable:$true] %s277
          %283 = dma.hbm_to_vmem [thread:$0]  %s276, 512, %s278, [#allocation9], 128, 128, 8
        $region16: #{tpu_custom_call.1} parent=11 // pred_fallthru
          _
        // Predicated region
        $region17: #{tpu_custom_call.1} parent=11 // pred_check
          %p284 = pneg %p178
        $region18: #{tpu_custom_call.1} parent=11 // pred_check_branch
          %286 = sbr.rel (%p284) target = $region20
        $region19: #{tpu_custom_call.1} parent=11 // pred_region
          %p287 = scmp.lt.s32.totalorder %s35, 0
          %s288 = scalar_select %p287, %s35, 0
          %s289 = scalar_lea.vmem %s4, %s288
        $region20: #{tpu_custom_call.1} parent=11 // pred_fallthru
          _
        // Predicated region
        $region21: #{tpu_custom_call.1} parent=11 // pred_check
          %p290 = pneg %p204
        $region22: #{tpu_custom_call.1} parent=11 // pred_check_branch
          %292 = sbr.rel (%p290) target = $region24
        $region23: #{tpu_custom_call.1} parent=11 // pred_region
          %s294 = ssub.s32 512, 512
          %295 = vsyncadd [#allocation9], %s294
          %s296 = smul.addr %s35, 4
          %s297 = smul.addr %s296, 128
          %s298 = scalar_lea.hbm %s5, %s297
          %s299 = sshll.u32 [#allocation10], 4
          %s300 = int_to_ptr.vmem [resolvable:$true] %s299
          %305 = dma.hbm_to_vmem [thread:$0]  %s298, 512, %s300, [#allocation9], 128, 128, 8
        $region24: #{tpu_custom_call.1} parent=11 // pred_fallthru
          _
        // Predicated region
        $region25: #{tpu_custom_call.1} parent=11 // pred_check
          %p306 = pneg %p225
        $region26: #{tpu_custom_call.1} parent=11 // pred_check_branch
          %308 = sbr.rel (%p306) target = $region28
        $region27: #{tpu_custom_call.1} parent=11 // pred_region
          _
        $region28: #{tpu_custom_call.1} parent=11 // pred_fallthru
          _
      $region12: #{tpu_custom_call.1} parent=5 // pred_fallthru
        _
      %p309 = scmp.lt.s32.totalorder %s23, 2
      // Predicated region
      $region29: #{tpu_custom_call.1} parent=5 // pred_check
        %p310 = pneg %p309
      $region30: #{tpu_custom_call.1} parent=5 // pred_check_branch
        %312 = sbr.rel (%p310) target = $region32
      $region31: #{tpu_custom_call.1} parent=5 // pred_region
        // Predicated region
        $region33: #{tpu_custom_call.1} parent=31 // pred_check
          %p313 = pneg %p64
        $region34: #{tpu_custom_call.1} parent=31 // pred_check_branch
          %315 = sbr.rel (%p313) target = $region36
        $region35: #{tpu_custom_call.1} parent=31 // pred_region
          %s316 = sand.u32 %s54, 1
          %s317 = scalar_lea.sflag [#allocation3], %s316
          %s318 = sand.u32 %s54, 1
          %s319 = smul.addr %s318, 8
          %s320 = scalar_lea.vmem [#allocation2], %s319
          %s322 = ssub.s32 128, 128
          %323 = vsyncadd %s317, %s322
          %s324 = sadd.s32 %s31, %s30
          %s325 = smul.addr %s324, 128
          %s326 = scalar_lea.hbm %s0, %s325
          %s328 = sshll.u32 %s320, 4
          %s329 = int_to_ptr.vmem [resolvable:$true] %s328
          %331 = dma.hbm_to_vmem [thread:$0]  %s326, 128, %s329, %s317
        $region36: #{tpu_custom_call.1} parent=31 // pred_fallthru
          _
        // Predicated region
        $region37: #{tpu_custom_call.1} parent=31 // pred_check
          %p332 = pneg %p92
        $region38: #{tpu_custom_call.1} parent=31 // pred_check_branch
          %334 = sbr.rel (%p332) target = $region40
        $region39: #{tpu_custom_call.1} parent=31 // pred_region
          %s335 = sand.u32 %s23, 1
          %s336 = scalar_lea.sflag [#allocation6], %s335
          %s337 = sand.u32 %s82, 1
          %s338 = smul.addr %s337, 8
          %s339 = scalar_lea.vmem [#allocation5], %s338
          %s341 = ssub.s32 128, 128
          %342 = vsyncadd %s336, %s341
          %s343 = sadd.s32 %s32, %s30
          %s344 = smul.addr %s343, 128
          %s345 = scalar_lea.hbm %s1, %s344
          %s347 = sshll.u32 %s339, 4
          %s348 = int_to_ptr.vmem [resolvable:$true] %s347
          %350 = dma.hbm_to_vmem [thread:$0]  %s345, 128, %s348, %s336
        $region40: #{tpu_custom_call.1} parent=31 // pred_fallthru
          _
        // Predicated region
        $region41: #{tpu_custom_call.1} parent=31 // pred_check
          %p351 = pneg %p120
        $region42: #{tpu_custom_call.1} parent=31 // pred_check_branch
          %353 = sbr.rel (%p351) target = $region44
        $region43: #{tpu_custom_call.1} parent=31 // pred_region
          %s354 = sand.u32 %s23, 1
          %s355 = scalar_lea.sflag [#allocation6], %s354
          %s356 = sand.u32 %s110, 1
          %s357 = smul.addr %s356, 8
          %s358 = scalar_lea.vmem [#allocation7], %s357
          %s360 = ssub.s32 128, 128
          %361 = vsyncadd %s355, %s360
          %s362 = sadd.s32 %s32, %s30
          %s363 = smul.addr %s362, 128
          %s364 = scalar_lea.hbm %s2, %s363
          %s366 = sshll.u32 %s358, 4
          %s367 = int_to_ptr.vmem [resolvable:$true] %s366
          %369 = dma.hbm_to_vmem [thread:$0]  %s364, 128, %s367, %s355
        $region44: #{tpu_custom_call.1} parent=31 // pred_fallthru
          _
      $region32: #{tpu_custom_call.1} parent=5 // pred_fallthru
        _
      %p370 = scmp.le.s32.totalorder 1, %s23
      %p371 = scmp.lt.s32.totalorder %s23, 3
      %p372 = pnand %p370, %p371
      %p373 = pneg %p372
      // Predicated region
      $region45: #{tpu_custom_call.1} parent=5 // pred_check
        _
      $region46: #{tpu_custom_call.1} parent=5 // pred_check_branch
        %375 = sbr.rel (%p372) target = $region48
      $region47: #{tpu_custom_call.1} parent=5 // pred_region
        %s376 = ssub.s32 %s23, 1
        %s377 = sand.u32 %s57, 1
        %s378 = scalar_lea.sflag [#allocation3], %s377
        %s379 = sand.u32 %s57, 1
        %s380 = smul.addr %s379, 8
        %s381 = scalar_lea.vmem [#allocation2], %s380
        // Predicated region
        $region49: #{tpu_custom_call.1} parent=47 // pred_check
          %p382 = pneg %p70
        $region50: #{tpu_custom_call.1} parent=47 // pred_check_branch
          %384 = sbr.rel (%p382) target = $region52
        $region51: #{tpu_custom_call.1} parent=47 // pred_region
          %385 = dma.done %s378, 128
        $region52: #{tpu_custom_call.1} parent=47 // pred_fallthru
          _
        %s386 = sand.u32 %s28, 1
        %s387 = scalar_lea.sflag [#allocation6], %s386
        %s388 = sand.u32 %s85, 1
        %s389 = smul.addr %s388, 8
        %s390 = scalar_lea.vmem [#allocation5], %s389
        // Predicated region
        $region53: #{tpu_custom_call.1} parent=47 // pred_check
          %p391 = pneg %p98
        $region54: #{tpu_custom_call.1} parent=47 // pred_check_branch
          %393 = sbr.rel (%p391) target = $region56
        $region55: #{tpu_custom_call.1} parent=47 // pred_region
          %394 = dma.done %s387, 128
        $region56: #{tpu_custom_call.1} parent=47 // pred_fallthru
          _
        %s395 = sand.u32 %s28, 1
        %s396 = scalar_lea.sflag [#allocation6], %s395
        %s397 = sand.u32 %s113, 1
        %s398 = smul.addr %s397, 8
        %s399 = scalar_lea.vmem [#allocation7], %s398
        // Predicated region
        $region57: #{tpu_custom_call.1} parent=47 // pred_check
          %p400 = pneg %p126
        $region58: #{tpu_custom_call.1} parent=47 // pred_check_branch
          %402 = sbr.rel (%p400) target = $region60
        $region59: #{tpu_custom_call.1} parent=47 // pred_region
          %403 = dma.done %s396, 128
        $region60: #{tpu_custom_call.1} parent=47 // pred_fallthru
          _
        // Predicated region
        $region61: #{tpu_custom_call.1} parent=47 // pred_check
          %p404 = pneg %p152
        $region62: #{tpu_custom_call.1} parent=47 // pred_check_branch
          %406 = sbr.rel (%p404) target = $region64
        $region63: #{tpu_custom_call.1} parent=47 // pred_region
          %407 = dma.done [#allocation9], 512
        $region64: #{tpu_custom_call.1} parent=47 // pred_fallthru
          _
        // Predicated region
        $region65: #{tpu_custom_call.1} parent=47 // pred_check
          %p408 = pneg %p204
        $region66: #{tpu_custom_call.1} parent=47 // pred_check_branch
          %410 = sbr.rel (%p408) target = $region68
        $region67: #{tpu_custom_call.1} parent=47 // pred_region
          %411 = dma.done [#allocation9], 512
        $region68: #{tpu_custom_call.1} parent=47 // pred_fallthru
          _
        %s412 = sand.u32 %s57, 1
        %s413 = scalar_lea.sflag [#allocation3], %s412
        %s414 = sand.u32 %s57, 1
        %s415 = smul.addr %s414, 8
        %s416 = scalar_lea.vmem [#allocation2], %s415
        %p417 = pneg %p70
        %p418 = pneg %p67
        %s419 = sand.u32 %s28, 1
        %s420 = scalar_lea.sflag [#allocation6], %s419
        %s421 = sand.u32 %s85, 1
        %s422 = smul.addr %s421, 8
        %s423 = scalar_lea.vmem [#allocation5], %s422
        %p424 = pneg %p98
        %p425 = pneg %p95
        %s426 = sand.u32 %s28, 1
        %s427 = scalar_lea.sflag [#allocation6], %s426
        %s428 = sand.u32 %s113, 1
        %s429 = smul.addr %s428, 8
        %s430 = scalar_lea.vmem [#allocation7], %s429
        %p431 = pneg %p126
        %p432 = pneg %p123
        %p433 = pneg %p152
        %p434 = pneg %p149
        %p435 = scmp.lt.s32.totalorder %s35, 0
        %s436 = scalar_select %p435, %s35, 0
        %s437 = scalar_lea.vmem %s4, %s436
        %p438 = pneg %p178
        %p439 = pneg %p175
        %p440 = pneg %p204
        %p441 = pneg %p201
        %p442 = pneg %p225
        %p443 = pneg %p222
        %p444 = pneg %p253
        %p445 = pneg %p250
        %s446 = sand.u32 %s240, 1
        %s447 = scalar_lea.sflag [#allocation4], %s446
        %s448 = sand.u32 %s240, 1
        %s449 = smul.addr %s448, 8
        %s450 = scalar_lea.vmem [#allocation11], %s449
        %p451 = scmp.lt.s32.totalorder %s35, 0
        %s452 = scalar_select %p451, %s35, 0
        %s453 = scalar_lea.vmem %s4, %s452
        %v454 = vld [vmem:[%s381] sm:$0xff]
        %v455 = vld [vmem:[%s390] sm:$0xff]
        %v456 = vld [vmem:[%s399] sm:$0xff]
        %v457 = vld [vmem:[#allocation8] sm:$0xff]
        %v458 = vld [vmem:[#allocation8 + $0x8] sm:$0xff]
        %v459 = vld [vmem:[#allocation8 + $0x10] sm:$0xff]
        %v460 = vld [vmem:[#allocation8 + $0x18] sm:$0xff]
        %v461 = vld [vmem:[#allocation10] sm:$0xff]
        %v462 = vld [vmem:[#allocation10 + $0x8] sm:$0xff]
        %v463 = vld [vmem:[#allocation10 + $0x10] sm:$0xff]
        %v464 = vld [vmem:[#allocation10 + $0x18] sm:$0xff]
        %v465 = vld [vmem:[%s453] sm:$0x1]
        %v467 = vlaneseq
        %v468 = vshrl.u32 %v467, 7
        %v469 = vsub.s32 0, %v468
        %v470 = vrot.slane %v465, %v469
        %vm472 = vcmask 261120
        %v474 = vsel %vm472, %v454, 0
        %476 = vmatprep.subr.mxu0 0.0
        %477 = vmatpush1.msra.mxu0 0.0
        %478 = vmatprep.subr.mxu0 0.0
        %479 = vmatpush1.msra.mxu0 0.0
        %480 = vmatprep.subr.mxu0 0.0
        %481 = vmatpush1.msra.mxu0 0.0
        %482 = vmatprep.subr.mxu0 0.0
        %483 = vmatpush1.msra.mxu0 0.0
        %484 = vmatprep.subr.mxu0 0.0
        %485 = vmatpush1.msra.mxu0 0.0
        %486 = vmatprep.subr.mxu0 0.0
        %487 = vmatpush1.msra.mxu0 0.0
        %488 = vmatprep.subr.mxu0 0.0
        %489 = vmatpush1.msra.mxu0 0.0
        %490 = vmatprep.subr.mxu0 0.0
        %491 = vmatpush1.msra.mxu0 0.0
        %492 = vmatprep.subr.mxu0 0.0
        %493 = vmatpush1.msra.mxu0 0.0
        %494 = vmatprep.subr.mxu0 0.0
        %495 = vmatpush1.msra.mxu0 0.0
        %496 = vmatprep.subr.mxu0 0.0
        %497 = vmatpush1.msra.mxu0 0.0
        %498 = vmatprep.subr.mxu0 0.0
        %499 = vmatpush1.msra.mxu0 0.0
        %500 = vmatprep.subr.mxu0 0.0
        %501 = vmatpush1.msra.mxu0 %v460
        %502 = vmatprep.subr.mxu0 0.0
        %503 = vmatpush1.msra.mxu0 %v459
        %504 = vmatprep.subr.mxu0 0.0
        %505 = vmatpush1.msra.mxu0 %v458
        %506 = vmatprep.subr.mxu0 0.0
        %507 = vmatpush1.msra.mxu0 %v457
        %508 = vmatprep.subr.mxu0 0.0
        %509 = vmatpush2.msra.mxu0 0.0
        %510 = vmatprep.subr.mxu0 0.0
        %511 = vmatpush2.msra.mxu0 0.0
        %512 = vmatprep.subr.mxu0 0.0
        %513 = vmatpush2.msra.mxu0 0.0
        %514 = vmatprep.subr.mxu0 0.0
        %515 = vmatpush2.msra.mxu0 0.0
        %516 = vmatprep.subr.mxu0 0.0
        %517 = vmatpush2.msra.mxu0 0.0
        %518 = vmatprep.subr.mxu0 0.0
        %519 = vmatpush2.msra.mxu0 0.0
        %520 = vmatprep.subr.mxu0 0.0
        %521 = vmatpush2.msra.mxu0 0.0
        %522 = vmatprep.subr.mxu0 0.0
        %523 = vmatpush2.msra.mxu0 0.0
        %524 = vmatprep.subr.mxu0 0.0
        %525 = vmatpush2.msra.mxu0 0.0
        %526 = vmatprep.subr.mxu0 0.0
        %527 = vmatpush2.msra.mxu0 0.0
        %528 = vmatprep.subr.mxu0 0.0
        %529 = vmatpush2.msra.mxu0 0.0
        %530 = vmatprep.subr.mxu0 0.0
        %531 = vmatpush2.msra.mxu0 0.0
        %532 = vmatprep.subr.mxu0 0.0
        %533 = vmatpush2.msra.mxu0 0.0
        %534 = vmatprep.subr.mxu0 0.0
        %535 = vmatpush2.msra.mxu0 0.0
        %536 = vmatprep.subr.mxu0 0.0
        %537 = vmatpush2.msra.mxu0 0.0
        %538 = vmatprep.subr.mxu0 0.0
        %539 = vmatpush2.msra.mxu0 0.0
        %540 = vmatprep.mubr.f32.mxu0 0.0
        %541 = vmatmul.mubr.f32.gmra.mxu0 %v474
        %v542 = vpop.f32.mrf.mxu0
        %v543 = vadd.f32 %v470, %v542
        %v544 = vpop.f32.mrf.mxu0
        %545 = vdwg.mxu0
        %v546 = vmul.f32 %v543, 0.35355338
        %vm547 = vcmask 64512
        %v549 = vsel %vm547, %v546, 0
        %v552 = vsel %vm547, %v455, 0
        %554 = vmatprep.subr.mxu0 0.0
        %555 = vmatpush1.xpose.msra.mxu0 0.0
        %556 = vmatprep.subr.mxu0 0.0
        %557 = vmatpush1.xpose.msra.mxu0 0.0
        %558 = vmatprep.subr.mxu0 0.0
        %559 = vmatpush1.xpose.msra.mxu0 0.0
        %560 = vmatprep.subr.mxu0 0.0
        %561 = vmatpush1.xpose.msra.mxu0 0.0
        %562 = vmatprep.subr.mxu0 0.0
        %563 = vmatpush1.xpose.msra.mxu0 0.0
        %564 = vmatprep.subr.mxu0 0.0
        %565 = vmatpush1.xpose.msra.mxu0 0.0
        %566 = vmatprep.subr.mxu0 0.0
        %567 = vmatpush1.xpose.msra.mxu0 0.0
        %568 = vmatprep.subr.mxu0 0.0
        %569 = vmatpush1.xpose.msra.mxu0 0.0
        %570 = vmatprep.subr.mxu0 0.0
        %571 = vmatpush1.xpose.msra.mxu0 0.0
        %572 = vmatprep.subr.mxu0 0.0
        %573 = vmatpush1.xpose.msra.mxu0 0.0
        %574 = vmatprep.subr.mxu0 0.0
        %575 = vmatpush1.xpose.msra.mxu0 0.0
        %576 = vmatprep.subr.mxu0 0.0
        %577 = vmatpush1.xpose.msra.mxu0 0.0
        %578 = vmatprep.subr.mxu0 0.0
        %579 = vmatpush1.xpose.msra.mxu0 0.0
        %580 = vmatprep.subr.mxu0 0.0
        %581 = vmatpush1.xpose.msra.mxu0 0.0
        %582 = vmatprep.subr.mxu0 0.0
        %583 = vmatpush1.xpose.msra.mxu0 0.0
        %584 = vmatprep.subr.mxu0 0.0
        %585 = vmatpush1.xpose.msra.mxu0 %v552
        %586 = vmatprep.subr.mxu0 0.0
        %587 = vmatpush2.xpose.msra.mxu0 0.0
        %588 = vmatprep.subr.mxu0 0.0
        %589 = vmatpush2.xpose.msra.mxu0 0.0
        %590 = vmatprep.subr.mxu0 0.0
        %591 = vmatpush2.xpose.msra.mxu0 0.0
        %592 = vmatprep.subr.mxu0 0.0
        %593 = vmatpush2.xpose.msra.mxu0 0.0
        %594 = vmatprep.subr.mxu0 0.0
        %595 = vmatpush2.xpose.msra.mxu0 0.0
        %596 = vmatprep.subr.mxu0 0.0
        %597 = vmatpush2.xpose.msra.mxu0 0.0
        %598 = vmatprep.subr.mxu0 0.0
        %599 = vmatpush2.xpose.msra.mxu0 0.0
        %600 = vmatprep.subr.mxu0 0.0
        %601 = vmatpush2.xpose.msra.mxu0 0.0
        %602 = vmatprep.subr.mxu0 0.0
        %603 = vmatpush2.xpose.msra.mxu0 0.0
        %604 = vmatprep.subr.mxu0 0.0
        %605 = vmatpush2.xpose.msra.mxu0 0.0
        %606 = vmatprep.subr.mxu0 0.0
        %607 = vmatpush2.xpose.msra.mxu0 0.0
        %608 = vmatprep.subr.mxu0 0.0
        %609 = vmatpush2.xpose.msra.mxu0 0.0
        %610 = vmatprep.subr.mxu0 0.0
        %611 = vmatpush2.xpose.msra.mxu0 0.0
        %612 = vmatprep.subr.mxu0 0.0
        %613 = vmatpush2.xpose.msra.mxu0 0.0
        %614 = vmatprep.subr.mxu0 0.0
        %615 = vmatpush2.xpose.msra.mxu0 0.0
        %616 = vmatprep.subr.mxu0 0.0
        %617 = vmatpush2.xpose.msra.mxu0 0.0
        %618 = vmatprep.mubr.f32.mxu0 0.0
        %619 = vmatmul.mubr.f32.gmra.mxu0 %v549
        %v620 = vpop.f32.mrf.mxu0
        %v621 = vadd.f32 0.0, %v620
        %v622 = vpop.f32.mrf.mxu0
        %623 = vdwg.mxu0
        %v624 = vsel %vm547, %v621, -inf
        %625 = vmax.xlane.f32.xlu0 %v624
        %v626 = vpop.xlane.xlu0 %625
        %v627 = vsub.f32 %v621, %v626
        %v628 = vmul.f32 %v627, 1.442695
        %v629 = vpow.pop %v628
        %v630 = vsel %vm547, %v629, 0.0
        %631 = vadd.xlane.f32.xlu0 %v630
        %v632 = vpop.xlane.xlu0 %631
        %v633 = vrcp.pop %v632
        %v634 = vmul.f32 %v629, %v633
        %v636 = vsel %vm547, %v634, 0
        %638 = vmatprep.subr.mxu0 0.0
        %639 = vmatpush1.msra.mxu0 0.0
        %640 = vmatprep.subr.mxu0 0.0
        %641 = vmatpush1.msra.mxu0 0.0
        %642 = vmatprep.subr.mxu0 0.0
        %643 = vmatpush1.msra.mxu0 0.0
        %644 = vmatprep.subr.mxu0 0.0
        %645 = vmatpush1.msra.mxu0 0.0
        %646 = vmatprep.subr.mxu0 0.0
        %647 = vmatpush1.msra.mxu0 0.0
        %648 = vmatprep.subr.mxu0 0.0
        %649 = vmatpush1.msra.mxu0 0.0
        %650 = vmatprep.subr.mxu0 0.0
        %651 = vmatpush1.msra.mxu0 0.0
        %652 = vmatprep.subr.mxu0 0.0
        %653 = vmatpush1.msra.mxu0 0.0
        %654 = vmatprep.subr.mxu0 0.0
        %655 = vmatpush1.msra.mxu0 0.0
        %656 = vmatprep.subr.mxu0 0.0
        %657 = vmatpush1.msra.mxu0 0.0
        %658 = vmatprep.subr.mxu0 0.0
        %659 = vmatpush1.msra.mxu0 0.0
        %660 = vmatprep.subr.mxu0 0.0
        %661 = vmatpush1.msra.mxu0 0.0
        %662 = vmatprep.subr.mxu0 0.0
        %663 = vmatpush1.msra.mxu0 0.0
        %664 = vmatprep.subr.mxu0 0.0
        %665 = vmatpush1.msra.mxu0 0.0
        %666 = vmatprep.subr.mxu0 0.0
        %667 = vmatpush1.msra.mxu0 0.0
        %668 = vmatprep.subr.mxu0 0.0
        %669 = vmatpush1.msra.mxu0 %v456
        %670 = vmatprep.subr.mxu0 0.0
        %671 = vmatpush2.msra.mxu0 0.0
        %672 = vmatprep.subr.mxu0 0.0
        %673 = vmatpush2.msra.mxu0 0.0
        %674 = vmatprep.subr.mxu0 0.0
        %675 = vmatpush2.msra.mxu0 0.0
        %676 = vmatprep.subr.mxu0 0.0
        %677 = vmatpush2.msra.mxu0 0.0
        %678 = vmatprep.subr.mxu0 0.0
        %679 = vmatpush2.msra.mxu0 0.0
        %680 = vmatprep.subr.mxu0 0.0
        %681 = vmatpush2.msra.mxu0 0.0
        %682 = vmatprep.subr.mxu0 0.0
        %683 = vmatpush2.msra.mxu0 0.0
        %684 = vmatprep.subr.mxu0 0.0
        %685 = vmatpush2.msra.mxu0 0.0
        %686 = vmatprep.subr.mxu0 0.0
        %687 = vmatpush2.msra.mxu0 0.0
        %688 = vmatprep.subr.mxu0 0.0
        %689 = vmatpush2.msra.mxu0 0.0
        %690 = vmatprep.subr.mxu0 0.0
        %691 = vmatpush2.msra.mxu0 0.0
        %692 = vmatprep.subr.mxu0 0.0
        %693 = vmatpush2.msra.mxu0 0.0
        %694 = vmatprep.subr.mxu0 0.0
        %695 = vmatpush2.msra.mxu0 0.0
        %696 = vmatprep.subr.mxu0 0.0
        %697 = vmatpush2.msra.mxu0 0.0
        %698 = vmatprep.subr.mxu0 0.0
        %699 = vmatpush2.msra.mxu0 0.0
        %700 = vmatprep.subr.mxu0 0.0
        %701 = vmatpush2.msra.mxu0 0.0
        %702 = vmatprep.mubr.f32.mxu0 0.0
        %703 = vmatmul.mubr.f32.gmra.mxu0 %v636
        %v704 = vpop.f32.mrf.mxu0
        %v705 = vadd.f32 0.0, %v704
        %v706 = vpop.f32.mrf.mxu0
        %707 = vdwg.mxu0
        %708 = vrot.lane.b32.xlu0 %v546, 120
        %v709 = vpop.permute.xlu0 %708
        %710 = vrot.lane.b32.xlu0 %v455, 120
        %v711 = vpop.permute.xlu0 %710
        %v712 = vsel %vm547, %v709, 0
        %v714 = vsel %vm547, %v711, 0
        %716 = vmatprep.subr.mxu0 0.0
        %717 = vmatpush1.xpose.msra.mxu0 0.0
        %718 = vmatprep.subr.mxu0 0.0
        %719 = vmatpush1.xpose.msra.mxu0 0.0
        %720 = vmatprep.subr.mxu0 0.0
        %721 = vmatpush1.xpose.msra.mxu0 0.0
        %722 = vmatprep.subr.mxu0 0.0
        %723 = vmatpush1.xpose.msra.mxu0 0.0
        %724 = vmatprep.subr.mxu0 0.0
        %725 = vmatpush1.xpose.msra.mxu0 0.0
        %726 = vmatprep.subr.mxu0 0.0
        %727 = vmatpush1.xpose.msra.mxu0 0.0
        %728 = vmatprep.subr.mxu0 0.0
        %729 = vmatpush1.xpose.msra.mxu0 0.0
        %730 = vmatprep.subr.mxu0 0.0
        %731 = vmatpush1.xpose.msra.mxu0 0.0
        %732 = vmatprep.subr.mxu0 0.0
        %733 = vmatpush1.xpose.msra.mxu0 0.0
        %734 = vmatprep.subr.mxu0 0.0
        %735 = vmatpush1.xpose.msra.mxu0 0.0
        %736 = vmatprep.subr.mxu0 0.0
        %737 = vmatpush1.xpose.msra.mxu0 0.0
        %738 = vmatprep.subr.mxu0 0.0
        %739 = vmatpush1.xpose.msra.mxu0 0.0
        %740 = vmatprep.subr.mxu0 0.0
        %741 = vmatpush1.xpose.msra.mxu0 0.0
        %742 = vmatprep.subr.mxu0 0.0
        %743 = vmatpush1.xpose.msra.mxu0 0.0
        %744 = vmatprep.subr.mxu0 0.0
        %745 = vmatpush1.xpose.msra.mxu0 0.0
        %746 = vmatprep.subr.mxu0 0.0
        %747 = vmatpush1.xpose.msra.mxu0 %v714
        %748 = vmatprep.subr.mxu0 0.0
        %749 = vmatpush2.xpose.msra.mxu0 0.0
        %750 = vmatprep.subr.mxu0 0.0
        %751 = vmatpush2.xpose.msra.mxu0 0.0
        %752 = vmatprep.subr.mxu0 0.0
        %753 = vmatpush2.xpose.msra.mxu0 0.0
        %754 = vmatprep.subr.mxu0 0.0
        %755 = vmatpush2.xpose.msra.mxu0 0.0
        %756 = vmatprep.subr.mxu0 0.0
        %757 = vmatpush2.xpose.msra.mxu0 0.0
        %758 = vmatprep.subr.mxu0 0.0
        %759 = vmatpush2.xpose.msra.mxu0 0.0
        %760 = vmatprep.subr.mxu0 0.0
        %761 = vmatpush2.xpose.msra.mxu0 0.0
        %762 = vmatprep.subr.mxu0 0.0
        %763 = vmatpush2.xpose.msra.mxu0 0.0
        %764 = vmatprep.subr.mxu0 0.0
        %765 = vmatpush2.xpose.msra.mxu0 0.0
        %766 = vmatprep.subr.mxu0 0.0
        %767 = vmatpush2.xpose.msra.mxu0 0.0
        %768 = vmatprep.subr.mxu0 0.0
        %769 = vmatpush2.xpose.msra.mxu0 0.0
        %770 = vmatprep.subr.mxu0 0.0
        %771 = vmatpush2.xpose.msra.mxu0 0.0
        %772 = vmatprep.subr.mxu0 0.0
        %773 = vmatpush2.xpose.msra.mxu0 0.0
        %774 = vmatprep.subr.mxu0 0.0
        %775 = vmatpush2.xpose.msra.mxu0 0.0
        %776 = vmatprep.subr.mxu0 0.0
        %777 = vmatpush2.xpose.msra.mxu0 0.0
        %778 = vmatprep.subr.mxu0 0.0
        %779 = vmatpush2.xpose.msra.mxu0 0.0
        %780 = vmatprep.mubr.f32.mxu0 0.0
        %781 = vmatmul.mubr.f32.gmra.mxu0 %v712
        %v782 = vpop.f32.mrf.mxu0
        %v783 = vadd.f32 0.0, %v782
        %v784 = vpop.f32.mrf.mxu0
        %785 = vdwg.mxu0
        %v786 = vsel %vm547, %v783, -inf
        %787 = vmax.xlane.f32.xlu0 %v786
        %v788 = vpop.xlane.xlu0 %787
        %v789 = vsub.f32 %v783, %v788
        %v790 = vmul.f32 %v789, 1.442695
        %v791 = vpow.pop %v790
        %v792 = vsel %vm547, %v791, 0.0
        %793 = vadd.xlane.f32.xlu0 %v792
        %v794 = vpop.xlane.xlu0 %793
        %v795 = vrcp.pop %v794
        %v796 = vmul.f32 %v791, %v795
        %798 = vrot.lane.b32.xlu0 %v456, 120
        %v799 = vpop.permute.xlu0 %798
        %v802 = vsel %vm547, %v796, 0
        %804 = vmatprep.subr.mxu0 0.0
        %805 = vmatpush1.msra.mxu0 0.0
        %806 = vmatprep.subr.mxu0 0.0
        %807 = vmatpush1.msra.mxu0 0.0
        %808 = vmatprep.subr.mxu0 0.0
        %809 = vmatpush1.msra.mxu0 0.0
        %810 = vmatprep.subr.mxu0 0.0
        %811 = vmatpush1.msra.mxu0 0.0
        %812 = vmatprep.subr.mxu0 0.0
        %813 = vmatpush1.msra.mxu0 0.0
        %814 = vmatprep.subr.mxu0 0.0
        %815 = vmatpush1.msra.mxu0 0.0
        %816 = vmatprep.subr.mxu0 0.0
        %817 = vmatpush1.msra.mxu0 0.0
        %818 = vmatprep.subr.mxu0 0.0
        %819 = vmatpush1.msra.mxu0 0.0
        %820 = vmatprep.subr.mxu0 0.0
        %821 = vmatpush1.msra.mxu0 0.0
        %822 = vmatprep.subr.mxu0 0.0
        %823 = vmatpush1.msra.mxu0 0.0
        %824 = vmatprep.subr.mxu0 0.0
        %825 = vmatpush1.msra.mxu0 0.0
        %826 = vmatprep.subr.mxu0 0.0
        %827 = vmatpush1.msra.mxu0 0.0
        %828 = vmatprep.subr.mxu0 0.0
        %829 = vmatpush1.msra.mxu0 0.0
        %830 = vmatprep.subr.mxu0 0.0
        %831 = vmatpush1.msra.mxu0 0.0
        %832 = vmatprep.subr.mxu0 0.0
        %833 = vmatpush1.msra.mxu0 0.0
        %834 = vmatprep.subr.mxu0 0.0
        %835 = vmatpush1.msra.mxu0 %v799
        %836 = vmatprep.subr.mxu0 0.0
        %837 = vmatpush2.msra.mxu0 0.0
        %838 = vmatprep.subr.mxu0 0.0
        %839 = vmatpush2.msra.mxu0 0.0
        %840 = vmatprep.subr.mxu0 0.0
        %841 = vmatpush2.msra.mxu0 0.0
        %842 = vmatprep.subr.mxu0 0.0
        %843 = vmatpush2.msra.mxu0 0.0
        %844 = vmatprep.subr.mxu0 0.0
        %845 = vmatpush2.msra.mxu0 0.0
        %846 = vmatprep.subr.mxu0 0.0
        %847 = vmatpush2.msra.mxu0 0.0
        %848 = vmatprep.subr.mxu0 0.0
        %849 = vmatpush2.msra.mxu0 0.0
        %850 = vmatprep.subr.mxu0 0.0
        %851 = vmatpush2.msra.mxu0 0.0
        %852 = vmatprep.subr.mxu0 0.0
        %853 = vmatpush2.msra.mxu0 0.0
        %854 = vmatprep.subr.mxu0 0.0
        %855 = vmatpush2.msra.mxu0 0.0
        %856 = vmatprep.subr.mxu0 0.0
        %857 = vmatpush2.msra.mxu0 0.0
        %858 = vmatprep.subr.mxu0 0.0
        %859 = vmatpush2.msra.mxu0 0.0
        %860 = vmatprep.subr.mxu0 0.0
        %861 = vmatpush2.msra.mxu0 0.0
        %862 = vmatprep.subr.mxu0 0.0
        %863 = vmatpush2.msra.mxu0 0.0
        %864 = vmatprep.subr.mxu0 0.0
        %865 = vmatpush2.msra.mxu0 0.0
        %866 = vmatprep.subr.mxu0 0.0
        %867 = vmatpush2.msra.mxu0 0.0
        %868 = vmatprep.mubr.f32.mxu0 0.0
        %869 = vmatmul.mubr.f32.gmra.mxu0 %v802
        %v870 = vpop.f32.mrf.mxu0
        %v871 = vadd.f32 0.0, %v870
        %v872 = vpop.f32.mrf.mxu0
        %873 = vdwg.mxu0
        %874 = vrot.lane.b32.xlu0 %v546, 112
        %v875 = vpop.permute.xlu0 %874
        %876 = vrot.lane.b32.xlu0 %v455, 112
        %v877 = vpop.permute.xlu0 %876
        %v878 = vsel %vm547, %v875, 0
        %v880 = vsel %vm547, %v877, 0
        %882 = vmatprep.subr.mxu0 0.0
        %883 = vmatpush1.xpose.msra.mxu0 0.0
        %884 = vmatprep.subr.mxu0 0.0
        %885 = vmatpush1.xpose.msra.mxu0 0.0
        %886 = vmatprep.subr.mxu0 0.0
        %887 = vmatpush1.xpose.msra.mxu0 0.0
        %888 = vmatprep.subr.mxu0 0.0
        %889 = vmatpush1.xpose.msra.mxu0 0.0
        %890 = vmatprep.subr.mxu0 0.0
        %891 = vmatpush1.xpose.msra.mxu0 0.0
        %892 = vmatprep.subr.mxu0 0.0
        %893 = vmatpush1.xpose.msra.mxu0 0.0
        %894 = vmatprep.subr.mxu0 0.0
        %895 = vmatpush1.xpose.msra.mxu0 0.0
        %896 = vmatprep.subr.mxu0 0.0
        %897 = vmatpush1.xpose.msra.mxu0 0.0
        %898 = vmatprep.subr.mxu0 0.0
        %899 = vmatpush1.xpose.msra.mxu0 0.0
        %900 = vmatprep.subr.mxu0 0.0
        %901 = vmatpush1.xpose.msra.mxu0 0.0
        %902 = vmatprep.subr.mxu0 0.0
        %903 = vmatpush1.xpose.msra.mxu0 0.0
        %904 = vmatprep.subr.mxu0 0.0
        %905 = vmatpush1.xpose.msra.mxu0 0.0
        %906 = vmatprep.subr.mxu0 0.0
        %907 = vmatpush1.xpose.msra.mxu0 0.0
        %908 = vmatprep.subr.mxu0 0.0
        %909 = vmatpush1.xpose.msra.mxu0 0.0
        %910 = vmatprep.subr.mxu0 0.0
        %911 = vmatpush1.xpose.msra.mxu0 0.0
        %912 = vmatprep.subr.mxu0 0.0
        %913 = vmatpush1.xpose.msra.mxu0 %v880
        %914 = vmatprep.subr.mxu0 0.0
        %915 = vmatpush2.xpose.msra.mxu0 0.0
        %916 = vmatprep.subr.mxu0 0.0
        %917 = vmatpush2.xpose.msra.mxu0 0.0
        %918 = vmatprep.subr.mxu0 0.0
        %919 = vmatpush2.xpose.msra.mxu0 0.0
        %920 = vmatprep.subr.mxu0 0.0
        %921 = vmatpush2.xpose.msra.mxu0 0.0
        %922 = vmatprep.subr.mxu0 0.0
        %923 = vmatpush2.xpose.msra.mxu0 0.0
        %924 = vmatprep.subr.mxu0 0.0
        %925 = vmatpush2.xpose.msra.mxu0 0.0
        %926 = vmatprep.subr.mxu0 0.0
        %927 = vmatpush2.xpose.msra.mxu0 0.0
        %928 = vmatprep.subr.mxu0 0.0
        %929 = vmatpush2.xpose.msra.mxu0 0.0
        %930 = vmatprep.subr.mxu0 0.0
        %931 = vmatpush2.xpose.msra.mxu0 0.0
        %932 = vmatprep.subr.mxu0 0.0
        %933 = vmatpush2.xpose.msra.mxu0 0.0
        %934 = vmatprep.subr.mxu0 0.0
        %935 = vmatpush2.xpose.msra.mxu0 0.0
        %936 = vmatprep.subr.mxu0 0.0
        %937 = vmatpush2.xpose.msra.mxu0 0.0
        %938 = vmatprep.subr.mxu0 0.0
        %939 = vmatpush2.xpose.msra.mxu0 0.0
        %940 = vmatprep.subr.mxu0 0.0
        %941 = vmatpush2.xpose.msra.mxu0 0.0
        %942 = vmatprep.subr.mxu0 0.0
        %943 = vmatpush2.xpose.msra.mxu0 0.0
        %944 = vmatprep.subr.mxu0 0.0
        %945 = vmatpush2.xpose.msra.mxu0 0.0
        %946 = vmatprep.mubr.f32.mxu0 0.0
        %947 = vmatmul.mubr.f32.gmra.mxu0 %v878
        %v948 = vpop.f32.mrf.mxu0
        %v949 = vadd.f32 0.0, %v948
        %v950 = vpop.f32.mrf.mxu0
        %951 = vdwg.mxu0
        %v952 = vsel %vm547, %v949, -inf
        %953 = vmax.xlane.f32.xlu0 %v952
        %v954 = vpop.xlane.xlu0 %953
        %v955 = vsub.f32 %v949, %v954
        %v956 = vmul.f32 %v955, 1.442695
        %v957 = vpow.pop %v956
        %v958 = vsel %vm547, %v957, 0.0
        %959 = vadd.xlane.f32.xlu0 %v958
        %v960 = vpop.xlane.xlu0 %959
        %v961 = vrcp.pop %v960
        %v962 = vmul.f32 %v957, %v961
        %963 = vrot.lane.b32.xlu0 %v456, 112
        %v964 = vpop.permute.xlu0 %963
        %v967 = vsel %vm547, %v962, 0
        %969 = vmatprep.subr.mxu0 0.0
        %970 = vmatpush1.msra.mxu0 0.0
        %971 = vmatprep.subr.mxu0 0.0
        %972 = vmatpush1.msra.mxu0 0.0
        %973 = vmatprep.subr.mxu0 0.0
        %974 = vmatpush1.msra.mxu0 0.0
        %975 = vmatprep.subr.mxu0 0.0
        %976 = vmatpush1.msra.mxu0 0.0
        %977 = vmatprep.subr.mxu0 0.0
        %978 = vmatpush1.msra.mxu0 0.0
        %979 = vmatprep.subr.mxu0 0.0
        %980 = vmatpush1.msra.mxu0 0.0
        %981 = vmatprep.subr.mxu0 0.0
        %982 = vmatpush1.msra.mxu0 0.0
        %983 = vmatprep.subr.mxu0 0.0
        %984 = vmatpush1.msra.mxu0 0.0
        %985 = vmatprep.subr.mxu0 0.0
        %986 = vmatpush1.msra.mxu0 0.0
        %987 = vmatprep.subr.mxu0 0.0
        %988 = vmatpush1.msra.mxu0 0.0
        %989 = vmatprep.subr.mxu0 0.0
        %990 = vmatpush1.msra.mxu0 0.0
        %991 = vmatprep.subr.mxu0 0.0
        %992 = vmatpush1.msra.mxu0 0.0
        %993 = vmatprep.subr.mxu0 0.0
        %994 = vmatpush1.msra.mxu0 0.0
        %995 = vmatprep.subr.mxu0 0.0
        %996 = vmatpush1.msra.mxu0 0.0
        %997 = vmatprep.subr.mxu0 0.0
        %998 = vmatpush1.msra.mxu0 0.0
        %999 = vmatprep.subr.mxu0 0.0
        %1000 = vmatpush1.msra.mxu0 %v964
        %1001 = vmatprep.subr.mxu0 0.0
        %1002 = vmatpush2.msra.mxu0 0.0
        %1003 = vmatprep.subr.mxu0 0.0
        %1004 = vmatpush2.msra.mxu0 0.0
        %1005 = vmatprep.subr.mxu0 0.0
        %1006 = vmatpush2.msra.mxu0 0.0
        %1007 = vmatprep.subr.mxu0 0.0
        %1008 = vmatpush2.msra.mxu0 0.0
        %1009 = vmatprep.subr.mxu0 0.0
        %1010 = vmatpush2.msra.mxu0 0.0
        %1011 = vmatprep.subr.mxu0 0.0
        %1012 = vmatpush2.msra.mxu0 0.0
        %1013 = vmatprep.subr.mxu0 0.0
        %1014 = vmatpush2.msra.mxu0 0.0
        %1015 = vmatprep.subr.mxu0 0.0
        %1016 = vmatpush2.msra.mxu0 0.0
        %1017 = vmatprep.subr.mxu0 0.0
        %1018 = vmatpush2.msra.mxu0 0.0
        %1019 = vmatprep.subr.mxu0 0.0
        %1020 = vmatpush2.msra.mxu0 0.0
        %1021 = vmatprep.subr.mxu0 0.0
        %1022 = vmatpush2.msra.mxu0 0.0
        %1023 = vmatprep.subr.mxu0 0.0
        %1024 = vmatpush2.msra.mxu0 0.0
        %1025 = vmatprep.subr.mxu0 0.0
        %1026 = vmatpush2.msra.mxu0 0.0
        %1027 = vmatprep.subr.mxu0 0.0
        %1028 = vmatpush2.msra.mxu0 0.0
        %1029 = vmatprep.subr.mxu0 0.0
        %1030 = vmatpush2.msra.mxu0 0.0
        %1031 = vmatprep.subr.mxu0 0.0
        %1032 = vmatpush2.msra.mxu0 0.0
        %1033 = vmatprep.mubr.f32.mxu0 0.0
        %1034 = vmatmul.mubr.f32.gmra.mxu0 %v967
        %v1035 = vpop.f32.mrf.mxu0
        %v1036 = vadd.f32 0.0, %v1035
        %v1037 = vpop.f32.mrf.mxu0
        %1038 = vdwg.mxu0
        %1039 = vrot.lane.b32.xlu0 %v546, 104
        %v1040 = vpop.permute.xlu0 %1039
        %1041 = vrot.lane.b32.xlu0 %v455, 104
        %v1042 = vpop.permute.xlu0 %1041
        %v1043 = vsel %vm547, %v1040, 0
        %v1045 = vsel %vm547, %v1042, 0
        %1047 = vmatprep.subr.mxu0 0.0
        %1048 = vmatpush1.xpose.msra.mxu0 0.0
        %1049 = vmatprep.subr.mxu0 0.0
        %1050 = vmatpush1.xpose.msra.mxu0 0.0
        %1051 = vmatprep.subr.mxu0 0.0
        %1052 = vmatpush1.xpose.msra.mxu0 0.0
        %1053 = vmatprep.subr.mxu0 0.0
        %1054 = vmatpush1.xpose.msra.mxu0 0.0
        %1055 = vmatprep.subr.mxu0 0.0
        %1056 = vmatpush1.xpose.msra.mxu0 0.0
        %1057 = vmatprep.subr.mxu0 0.0
        %1058 = vmatpush1.xpose.msra.mxu0 0.0
        %1059 = vmatprep.subr.mxu0 0.0
        %1060 = vmatpush1.xpose.msra.mxu0 0.0
        %1061 = vmatprep.subr.mxu0 0.0
        %1062 = vmatpush1.xpose.msra.mxu0 0.0
        %1063 = vmatprep.subr.mxu0 0.0
        %1064 = vmatpush1.xpose.msra.mxu0 0.0
        %1065 = vmatprep.subr.mxu0 0.0
        %1066 = vmatpush1.xpose.msra.mxu0 0.0
        %1067 = vmatprep.subr.mxu0 0.0
        %1068 = vmatpush1.xpose.msra.mxu0 0.0
        %1069 = vmatprep.subr.mxu0 0.0
        %1070 = vmatpush1.xpose.msra.mxu0 0.0
        %1071 = vmatprep.subr.mxu0 0.0
        %1072 = vmatpush1.xpose.msra.mxu0 0.0
        %1073 = vmatprep.subr.mxu0 0.0
        %1074 = vmatpush1.xpose.msra.mxu0 0.0
        %1075 = vmatprep.subr.mxu0 0.0
        %1076 = vmatpush1.xpose.msra.mxu0 0.0
        %1077 = vmatprep.subr.mxu0 0.0
        %1078 = vmatpush1.xpose.msra.mxu0 %v1045
        %1079 = vmatprep.subr.mxu0 0.0
        %1080 = vmatpush2.xpose.msra.mxu0 0.0
        %1081 = vmatprep.subr.mxu0 0.0
        %1082 = vmatpush2.xpose.msra.mxu0 0.0
        %1083 = vmatprep.subr.mxu0 0.0
        %1084 = vmatpush2.xpose.msra.mxu0 0.0
        %1085 = vmatprep.subr.mxu0 0.0
        %1086 = vmatpush2.xpose.msra.mxu0 0.0
        %1087 = vmatprep.subr.mxu0 0.0
        %1088 = vmatpush2.xpose.msra.mxu0 0.0
        %1089 = vmatprep.subr.mxu0 0.0
        %1090 = vmatpush2.xpose.msra.mxu0 0.0
        %1091 = vmatprep.subr.mxu0 0.0
        %1092 = vmatpush2.xpose.msra.mxu0 0.0
        %1093 = vmatprep.subr.mxu0 0.0
        %1094 = vmatpush2.xpose.msra.mxu0 0.0
        %1095 = vmatprep.subr.mxu0 0.0
        %1096 = vmatpush2.xpose.msra.mxu0 0.0
        %1097 = vmatprep.subr.mxu0 0.0
        %1098 = vmatpush2.xpose.msra.mxu0 0.0
        %1099 = vmatprep.subr.mxu0 0.0
        %1100 = vmatpush2.xpose.msra.mxu0 0.0
        %1101 = vmatprep.subr.mxu0 0.0
        %1102 = vmatpush2.xpose.msra.mxu0 0.0
        %1103 = vmatprep.subr.mxu0 0.0
        %1104 = vmatpush2.xpose.msra.mxu0 0.0
        %1105 = vmatprep.subr.mxu0 0.0
        %1106 = vmatpush2.xpose.msra.mxu0 0.0
        %1107 = vmatprep.subr.mxu0 0.0
        %1108 = vmatpush2.xpose.msra.mxu0 0.0
        %1109 = vmatprep.subr.mxu0 0.0
        %1110 = vmatpush2.xpose.msra.mxu0 0.0
        %1111 = vmatprep.mubr.f32.mxu0 0.0
        %1112 = vmatmul.mubr.f32.gmra.mxu0 %v1043
        %v1113 = vpop.f32.mrf.mxu0
        %v1114 = vadd.f32 0.0, %v1113
        %v1115 = vpop.f32.mrf.mxu0
        %1116 = vdwg.mxu0
        %v1117 = vsel %vm547, %v1114, -inf
        %1118 = vmax.xlane.f32.xlu0 %v1117
        %v1119 = vpop.xlane.xlu0 %1118
        %v1120 = vsub.f32 %v1114, %v1119
        %v1121 = vmul.f32 %v1120, 1.442695
        %v1122 = vpow.pop %v1121
        %v1123 = vsel %vm547, %v1122, 0.0
        %1124 = vadd.xlane.f32.xlu0 %v1123
        %v1125 = vpop.xlane.xlu0 %1124
        %v1126 = vrcp.pop %v1125
        %v1127 = vmul.f32 %v1122, %v1126
        %1128 = vrot.lane.b32.xlu0 %v456, 104
        %v1129 = vpop.permute.xlu0 %1128
        %v1132 = vsel %vm547, %v1127, 0
        %1134 = vmatprep.subr.mxu0 0.0
        %1135 = vmatpush1.msra.mxu0 0.0
        %1136 = vmatprep.subr.mxu0 0.0
        %1137 = vmatpush1.msra.mxu0 0.0
        %1138 = vmatprep.subr.mxu0 0.0
        %1139 = vmatpush1.msra.mxu0 0.0
        %1140 = vmatprep.subr.mxu0 0.0
        %1141 = vmatpush1.msra.mxu0 0.0
        %1142 = vmatprep.subr.mxu0 0.0
        %1143 = vmatpush1.msra.mxu0 0.0
        %1144 = vmatprep.subr.mxu0 0.0
        %1145 = vmatpush1.msra.mxu0 0.0
        %1146 = vmatprep.subr.mxu0 0.0
        %1147 = vmatpush1.msra.mxu0 0.0
        %1148 = vmatprep.subr.mxu0 0.0
        %1149 = vmatpush1.msra.mxu0 0.0
        %1150 = vmatprep.subr.mxu0 0.0
        %1151 = vmatpush1.msra.mxu0 0.0
        %1152 = vmatprep.subr.mxu0 0.0
        %1153 = vmatpush1.msra.mxu0 0.0
        %1154 = vmatprep.subr.mxu0 0.0
        %1155 = vmatpush1.msra.mxu0 0.0
        %1156 = vmatprep.subr.mxu0 0.0
        %1157 = vmatpush1.msra.mxu0 0.0
        %1158 = vmatprep.subr.mxu0 0.0
        %1159 = vmatpush1.msra.mxu0 0.0
        %1160 = vmatprep.subr.mxu0 0.0
        %1161 = vmatpush1.msra.mxu0 0.0
        %1162 = vmatprep.subr.mxu0 0.0
        %1163 = vmatpush1.msra.mxu0 0.0
        %1164 = vmatprep.subr.mxu0 0.0
        %1165 = vmatpush1.msra.mxu0 %v1129
        %1166 = vmatprep.subr.mxu0 0.0
        %1167 = vmatpush2.msra.mxu0 0.0
        %1168 = vmatprep.subr.mxu0 0.0
        %1169 = vmatpush2.msra.mxu0 0.0
        %1170 = vmatprep.subr.mxu0 0.0
        %1171 = vmatpush2.msra.mxu0 0.0
        %1172 = vmatprep.subr.mxu0 0.0
        %1173 = vmatpush2.msra.mxu0 0.0
        %1174 = vmatprep.subr.mxu0 0.0
        %1175 = vmatpush2.msra.mxu0 0.0
        %1176 = vmatprep.subr.mxu0 0.0
        %1177 = vmatpush2.msra.mxu0 0.0
        %1178 = vmatprep.subr.mxu0 0.0
        %1179 = vmatpush2.msra.mxu0 0.0
        %1180 = vmatprep.subr.mxu0 0.0
        %1181 = vmatpush2.msra.mxu0 0.0
        %1182 = vmatprep.subr.mxu0 0.0
        %1183 = vmatpush2.msra.mxu0 0.0
        %1184 = vmatprep.subr.mxu0 0.0
        %1185 = vmatpush2.msra.mxu0 0.0
        %1186 = vmatprep.subr.mxu0 0.0
        %1187 = vmatpush2.msra.mxu0 0.0
        %1188 = vmatprep.subr.mxu0 0.0
        %1189 = vmatpush2.msra.mxu0 0.0
        %1190 = vmatprep.subr.mxu0 0.0
        %1191 = vmatpush2.msra.mxu0 0.0
        %1192 = vmatprep.subr.mxu0 0.0
        %1193 = vmatpush2.msra.mxu0 0.0
        %1194 = vmatprep.subr.mxu0 0.0
        %1195 = vmatpush2.msra.mxu0 0.0
        %1196 = vmatprep.subr.mxu0 0.0
        %1197 = vmatpush2.msra.mxu0 0.0
        %1198 = vmatprep.mubr.f32.mxu0 0.0
        %1199 = vmatmul.mubr.f32.gmra.mxu0 %v1132
        %v1200 = vpop.f32.mrf.mxu0
        %v1201 = vadd.f32 0.0, %v1200
        %v1202 = vpop.f32.mrf.mxu0
        %1203 = vdwg.mxu0
        %1205 = vrot.lane.b32.xlu0 %v871, 8
        %v1206 = vpop.permute.xlu0 %1205
        %1209 = vrot.lane.b32.xlu0 %v1036, 16
        %v1210 = vpop.permute.xlu0 %1209
        %1213 = vrot.lane.b32.xlu0 %v1201, 24
        %v1214 = vpop.permute.xlu0 %1213
        %v1216 = vsel %vm547, %v705, %v1206
        %vm1217 = vcmask 130048
        %v1218 = vsel %vm1217, %v1216, %v1210
        %vm1219 = vcmask 195584
        %v1220 = vsel %vm1219, %v1218, %v1214
        %v1222 = vsel %vm472, %v1220, 0
        %1224 = vmatprep.subr.mxu0 0.0
        %1225 = vmatpush1.msra.mxu0 0.0
        %1226 = vmatprep.subr.mxu0 0.0
        %1227 = vmatpush1.msra.mxu0 0.0
        %1228 = vmatprep.subr.mxu0 0.0
        %1229 = vmatpush1.msra.mxu0 0.0
        %1230 = vmatprep.subr.mxu0 0.0
        %1231 = vmatpush1.msra.mxu0 0.0
        %1232 = vmatprep.subr.mxu0 0.0
        %1233 = vmatpush1.msra.mxu0 0.0
        %1234 = vmatprep.subr.mxu0 0.0
        %1235 = vmatpush1.msra.mxu0 0.0
        %1236 = vmatprep.subr.mxu0 0.0
        %1237 = vmatpush1.msra.mxu0 0.0
        %1238 = vmatprep.subr.mxu0 0.0
        %1239 = vmatpush1.msra.mxu0 0.0
        %1240 = vmatprep.subr.mxu0 0.0
        %1241 = vmatpush1.msra.mxu0 0.0
        %1242 = vmatprep.subr.mxu0 0.0
        %1243 = vmatpush1.msra.mxu0 0.0
        %1244 = vmatprep.subr.mxu0 0.0
        %1245 = vmatpush1.msra.mxu0 0.0
        %1246 = vmatprep.subr.mxu0 0.0
        %1247 = vmatpush1.msra.mxu0 0.0
        %1248 = vmatprep.subr.mxu0 0.0
        %1249 = vmatpush1.msra.mxu0 %v464
        %1250 = vmatprep.subr.mxu0 0.0
        %1251 = vmatpush1.msra.mxu0 %v463
        %1252 = vmatprep.subr.mxu0 0.0
        %1253 = vmatpush1.msra.mxu0 %v462
        %1254 = vmatprep.subr.mxu0 0.0
        %1255 = vmatpush1.msra.mxu0 %v461
        %1256 = vmatprep.subr.mxu0 0.0
        %1257 = vmatpush2.msra.mxu0 0.0
        %1258 = vmatprep.subr.mxu0 0.0
        %1259 = vmatpush2.msra.mxu0 0.0
        %1260 = vmatprep.subr.mxu0 0.0
        %1261 = vmatpush2.msra.mxu0 0.0
        %1262 = vmatprep.subr.mxu0 0.0
        %1263 = vmatpush2.msra.mxu0 0.0
        %1264 = vmatprep.subr.mxu0 0.0
        %1265 = vmatpush2.msra.mxu0 0.0
        %1266 = vmatprep.subr.mxu0 0.0
        %1267 = vmatpush2.msra.mxu0 0.0
        %1268 = vmatprep.subr.mxu0 0.0
        %1269 = vmatpush2.msra.mxu0 0.0
        %1270 = vmatprep.subr.mxu0 0.0
        %1271 = vmatpush2.msra.mxu0 0.0
        %1272 = vmatprep.subr.mxu0 0.0
        %1273 = vmatpush2.msra.mxu0 0.0
        %1274 = vmatprep.subr.mxu0 0.0
        %1275 = vmatpush2.msra.mxu0 0.0
        %1276 = vmatprep.subr.mxu0 0.0
        %1277 = vmatpush2.msra.mxu0 0.0
        %1278 = vmatprep.subr.mxu0 0.0
        %1279 = vmatpush2.msra.mxu0 0.0
        %1280 = vmatprep.subr.mxu0 0.0
        %1281 = vmatpush2.msra.mxu0 0.0
        %1282 = vmatprep.subr.mxu0 0.0
        %1283 = vmatpush2.msra.mxu0 0.0
        %1284 = vmatprep.subr.mxu0 0.0
        %1285 = vmatpush2.msra.mxu0 0.0
        %1286 = vmatprep.subr.mxu0 0.0
        %1287 = vmatpush2.msra.mxu0 0.0
        %1288 = vmatprep.mubr.f32.mxu0 0.0
        %1289 = vmatmul.mubr.f32.gmra.mxu0 %v1222
        %v1290 = vpop.f32.mrf.mxu0
        %v1291 = vadd.f32 0.0, %v1290
        %v1292 = vpop.f32.mrf.mxu0
        %1293 = vdwg.mxu0
        %p1294 = scmp.eq.s32.totalorder %s35, 0
        // Predicated region
        $region69: #{tpu_custom_call.1} parent=47 // pred_check
          %p1295 = pneg %p1294
        $region70: #{tpu_custom_call.1} parent=47 // pred_check_branch
          %1297 = sbr.rel (%p1295) target = $region72
        $region71: #{tpu_custom_call.1} parent=47 // pred_region
          %1298 = vst.msk [vmem:[%s450] sm:$0xff] %vm472, %v1291
        $region72: #{tpu_custom_call.1} parent=47 // pred_fallthru
          _
        %p1299 = scmp.ne.s32.totalorder %s35, 0
        // Predicated region
        $region73: #{tpu_custom_call.1} parent=47 // pred_check
          %p1300 = pneg %p1299
        $region74: #{tpu_custom_call.1} parent=47 // pred_check_branch
          %1302 = sbr.rel (%p1300) target = $region76
        $region75: #{tpu_custom_call.1} parent=47 // pred_region
          %v1303 = vld [vmem:[%s450] sm:$0xff]
          %v1304 = vadd.f32 %v1303, %v1291
          %1305 = vst.msk [vmem:[%s450] sm:$0xff] %vm472, %v1304
        $region76: #{tpu_custom_call.1} parent=47 // pred_fallthru
          _
        // Predicated region
        $region77: #{tpu_custom_call.1} parent=47 // pred_check
          %p1306 = pneg %p1294
        $region78: #{tpu_custom_call.1} parent=47 // pred_check_branch
          %1308 = sbr.rel (%p1306) target = $region80
        $region79: #{tpu_custom_call.1} parent=47 // pred_region
          %v1309 = vld [vmem:[%s450] sm:$0xff]
          %v1310 = vld [vmem:[%s6] sm:$0x1]
          %v1312 = vlaneseq
          %v1313 = vshrl.u32 %v1312, 7
          %v1314 = vsub.s32 0, %v1313
          %v1315 = vrot.slane %v1310, %v1314
          %v1317 = vadd.f32 %v1309, %v1315
          %1318 = vst.msk [vmem:[%s450] sm:$0xff] %vm472, %v1317
        $region80: #{tpu_custom_call.1} parent=47 // pred_fallthru
          _
        %s1319 = sand.u32 %s240, 1
        %s1320 = scalar_lea.sflag [#allocation4], %s1319
        %s1321 = sand.u32 %s240, 1
        %s1322 = smul.addr %s1321, 8
        %s1323 = scalar_lea.vmem [#allocation11], %s1322
        // Predicated region
        $region81: #{tpu_custom_call.1} parent=47 // pred_check
          %p1324 = pneg %p250
        $region82: #{tpu_custom_call.1} parent=47 // pred_check_branch
          %1326 = sbr.rel (%p1324) target = $region84
        $region83: #{tpu_custom_call.1} parent=47 // pred_region
          %s1328 = ssub.s32 128, 128
          %1329 = vsyncadd %s1320, %s1328
          %s1330 = sadd.s32 %s34, %s33
          %s1331 = smul.addr %s1330, 128
          %s1332 = scalar_lea.hbm %s7, %s1331
          %s1334 = sshll.u32 %s1323, 4
          %s1335 = int_to_ptr.vmem [resolvable:$true] %s1334
          %1337 = dma.vmem_to_hbm [thread:$0]  %s1335, 128, %s1332, %s1320
        $region84: #{tpu_custom_call.1} parent=47 // pred_fallthru
          _
      $region48: #{tpu_custom_call.1} parent=5 // pred_fallthru
        _
      %p1338 = scmp.le.s32.totalorder 2, %s23
      // Predicated region
      $region85: #{tpu_custom_call.1} parent=5 // pred_check
        %p1339 = pneg %p1338
      $region86: #{tpu_custom_call.1} parent=5 // pred_check_branch
        %1341 = sbr.rel (%p1339) target = $region88
      $region87: #{tpu_custom_call.1} parent=5 // pred_region
        %s1342 = ssub.s32 %s23, 2
        // Predicated region
        $region89: #{tpu_custom_call.1} parent=87 // pred_check
          %p1343 = pneg %p256
        $region90: #{tpu_custom_call.1} parent=87 // pred_check_branch
          %1345 = sbr.rel (%p1343) target = $region92
        $region91: #{tpu_custom_call.1} parent=87 // pred_region
          %s1346 = sand.u32 %s241, 1
          %s1347 = scalar_lea.sflag [#allocation4], %s1346
          %s1348 = sand.u32 %s241, 1
          %s1349 = smul.addr %s1348, 8
          %s1350 = scalar_lea.vmem [#allocation11], %s1349
          %1351 = dma.done %s1347, 128
        $region92: #{tpu_custom_call.1} parent=87 // pred_fallthru
          _
      $region88: #{tpu_custom_call.1} parent=5 // pred_fallthru
        _
    $region6: #{tpu_custom_call.1} parent=1 // loop_footer
      %s27 = sadd.s32 1, %s23
    $region7: #{tpu_custom_call.1} parent=1 // loop_footer_branch
      %22 = sbr.rel target = $region3
    $region8: #{tpu_custom_call.1} parent=1 // loop_exit
      _
    %1352 = vsyncpa [#allocation3], 1
    %s1353 = scalar_lea.sflag [#allocation3], 1
    %1354 = vsyncpa %s1353, 1
    %1355 = vsyncpa [#allocation6], 1
    %s1356 = scalar_lea.sflag [#allocation6], 1
    %1357 = vsyncpa %s1356, 1
    %1358 = vsyncpa [#allocation9], 1
    %1359 = vsyncpa [#allocation4], 1
    %s1360 = scalar_lea.sflag [#allocation4], 1
    %1361 = vsyncpa %s1360, 1

</llo_original>
